<compile_context>
chip_gen: v6e
topology: v6e:2x2x1
jax: 0.10.0
libtpu: 0.0.40
codegen_flags: <defaults>
</compile_context>

<pallas_src>
import numpy as np
import jax
import jax.numpy as jnp
from jax.experimental import pallas as pl
from jax.experimental.pallas import tpu as pltpu

IN_CHANS = 5
EMBED_DIM = 96
PATCH = 4
NUM_HEADS = 3
HEAD_DIM = EMBED_DIM // NUM_HEADS
MLP_HIDDEN = int(EMBED_DIM * 4.0)
LN_EPS = 1e-5


# ----------------------------- in-kernel helpers -----------------------------

def _layernorm(x, gamma, beta):
    # Independent E[x] / E[x^2] reductions (var = E[x^2] - E[x]^2) so the two
    # cross-lane XLU reductions are not serially dependent.
    mu = jnp.mean(x, axis=-1, keepdims=True)
    msq = jnp.mean(x * x, axis=-1, keepdims=True)
    var = msq - mu * mu
    return (x - mu) * jax.lax.rsqrt(var + LN_EPS) * gamma + beta


def _gelu_tanh(x):
    # tanh-form GELU: one EUP tanh + a few VPU ops (far fewer live temporaries
    # than the A&S erf). ~1e-3 max abs deviation from the exact-erf nn.GELU().
    c = np.float32(np.sqrt(2.0 / np.pi))
    return 0.5 * x * (1.0 + jnp.tanh(c * (x + np.float32(0.044715) * x * x * x)))


# ------------------------------- fused Pallas kernel --------------------------

def fused_model_kernel(x_ref, wproj_ref, wqkv_ref, bqkv_ref, wo_ref,
                       wm1_ref, bm1_ref, wm2_ref, wh1_ref, vecs_ref,
                       mask_ref, gath_ref, tail_ref,
                       up_ref, logits_ref):
    f32 = jnp.float32
    bf16 = jnp.bfloat16
    B, L = logits_ref.shape
    BL = B * L
    howo = up_ref.shape[1]
    C = EMBED_DIM

    # packed per-channel parameters (rows of the (12, C) f32 slab)
    conv_b = vecs_ref[0:1, :]
    g_pe, b_pe = vecs_ref[1:2, :], vecs_ref[2:3, :]
    g_n1, b_n1 = vecs_ref[3:4, :], vecs_ref[4:5, :]
    bo = vecs_ref[5:6, :]
    g_n2, b_n2 = vecs_ref[6:7, :], vecs_ref[7:8, :]
    bm2 = vecs_ref[8:9, :]
    bh1 = vecs_ref[9:10, :]
    wh2 = vecs_ref[10:11, :]
    b2 = vecs_ref[11:12, 0:1]

    # --- patch embedding: stride-ps conv == per-patch matmul, then LayerNorm ---
    z = jnp.dot(x_ref[...].astype(bf16), wproj_ref[...],
                preferred_element_type=f32) + conv_b
    z = _layernorm(z, g_pe, b_pe)                                        # (BL, C) f32

    # --- swin block: norm1 -> fused-QKV MHA -> residual ---
    y = _layernorm(z, g_n1, b_n1)
    qkv = jnp.dot(y.astype(bf16), wqkv_ref[...],
                  preferred_element_type=f32) + bqkv_ref[...]            # (BL, 3C)

    def stack_heads(base):
        # (BL, C) column head-blocks -> (NH*BL, HEAD_DIM) head-major row stack,
        # cast to bf16 for the MXU (halves attention-region vreg footprint).
        return jnp.concatenate(
            [qkv[:, base + h * HEAD_DIM: base + (h + 1) * HEAD_DIM]
             for h in range(NUM_HEADS)], axis=0).astype(bf16)

    qs = stack_heads(0)            # 1/sqrt(Dh) already folded into Q weights/bias
    ks = stack_heads(C)
    vs = stack_heads(2 * C)

    # block-diagonal mask is a precomputed additive slab (no in-kernel iota);
    # softmax statistics kept in f32.
    s = jax.lax.dot_general(qs, ks, (((1,), (1,)), ((), ())),
                            preferred_element_type=f32) + mask_ref[...]  # (n, n)
    m = jnp.max(s, axis=-1, keepdims=True)
    e = jnp.exp(s - m)
    p = e * pl.reciprocal(jnp.sum(e, axis=-1, keepdims=True), approx=True)
    o_s = jnp.dot(p.astype(bf16), vs, preferred_element_type=f32)        # (n, Dh)
    heads = jnp.concatenate(
        [o_s[h * BL:(h + 1) * BL, :] for h in range(NUM_HEADS)], axis=1) # (BL, C)
    z = z + jnp.dot(heads.astype(bf16), wo_ref[...],
                    preferred_element_type=f32) + bo

    # --- swin block: norm2 -> Linear -> GELU -> Linear -> residual ---
    y = _layernorm(z, g_n2, b_n2)
    y = jnp.dot(y.astype(bf16), wm1_ref[...],
                preferred_element_type=f32) + bm1_ref[...]
    y = _gelu_tanh(y)
    z = z + jnp.dot(y.astype(bf16), wm2_ref[...],
                    preferred_element_type=f32) + bm2

    # --- head: Linear -> ReLU -> Linear(->1) ---
    h1 = jnp.maximum(
        jnp.dot(z.astype(bf16), wh1_ref[...], preferred_element_type=f32) + bh1,
        0.0)
    h2 = jnp.sum(h1 * wh2, axis=-1, keepdims=True) + b2                  # (BL, 1)

    # --- merged tail: ONE matmul does both the scatter to a (B, L) heat map
    # and the fused bilinear upsample.  tail = [tile(kron(A_h,A_w), B) | scat],
    # gath selects each batch's rows.  Slices are lane-aligned (howo % 128 == 0).
    out = jnp.dot(gath_ref[...], h2 * tail_ref[...],
                  preferred_element_type=f32)                            # (B, Ho*Wo + L)
    up_ref[...] = out[:, :howo]
    logits_ref[...] = out[:, howo:]


# ------------------------------ JAX-side wrappers ------------------------------

def bilinear_matrix(in_size, out_size):
    """Row-interpolation matrix for F.interpolate(bilinear, align_corners=False)."""
    A = np.zeros((out_size, in_size), dtype=np.float32)
    scale = in_size / out_size
    for o in range(out_size):
        src = scale * (o + 0.5) - 0.5
        src = max(src, 0.0)
        i0 = min(int(np.floor(src)), in_size - 1)
        i1 = min(i0 + 1, in_size - 1)
        lam1 = src - i0
        A[o, i0] += 1.0 - lam1
        A[o, i1] += lam1
    return A


def init_params(key):
    C = EMBED_DIM
    ks = jax.random.split(key, 14)

    def rnd(k, shape, scale=0.05):
        return scale * jax.random.normal(k, shape, dtype=jnp.float32)

    ones = jnp.ones((C,), jnp.float32)
    zeros = jnp.zeros((C,), jnp.float32)
    return dict(
        conv_w=rnd(ks[0], (C, IN_CHANS, PATCH, PATCH)),
        conv_b=rnd(ks[1], (C,)),
        g_pe=ones, b_pe=zeros,
        g_n1=ones, b_n1=zeros,
        g_n2=ones, b_n2=zeros,
        in_proj_w=rnd(ks[2], (3 * C, C)),
        in_proj_b=rnd(ks[3], (3 * C,)),
        out_proj_w=rnd(ks[4], (C, C)),
        out_proj_b=rnd(ks[5], (C,)),
        mlp_w1=rnd(ks[6], (MLP_HIDDEN, C)),
        mlp_b1=rnd(ks[7], (MLP_HIDDEN,)),
        mlp_w2=rnd(ks[8], (C, MLP_HIDDEN)),
        mlp_b2=rnd(ks[9], (C,)),
        head_w1=rnd(ks[10], (C, C)),
        head_b1=rnd(ks[11], (C,)),
        head_w2=rnd(ks[12], (1, C)),
        head_b2=rnd(ks[13], (1,)),
    )


def _kernel_weights(p, p_pad):
    """PyTorch-layout params -> bf16 x@W matrices + f32 biases + (12, C) slab."""
    C = EMBED_DIM
    P = IN_CHANS * PATCH * PATCH
    bf16 = jnp.bfloat16
    wproj = jnp.pad(p["conv_w"].reshape(C, P).T,
                    ((0, p_pad - P), (0, 0))).astype(bf16)     # (Ppad, C)
    # fold the 1/sqrt(Dh) attention scale into the Q block of the fused QKV.
    qscale = jnp.concatenate([
        jnp.full((C,), 1.0 / np.sqrt(HEAD_DIM), jnp.float32),
        jnp.ones((2 * C,), jnp.float32)])
    wqkv = (p["in_proj_w"].T * qscale[None, :]).astype(bf16)   # (C, 3C)
    bqkv = (p["in_proj_b"] * qscale).reshape(1, 3 * C)         # f32
    wo = p["out_proj_w"].T.astype(bf16)                        # (C, C)
    wm1 = p["mlp_w1"].T.astype(bf16)                           # (C, 4C)
    bm1 = p["mlp_b1"].reshape(1, MLP_HIDDEN)                   # f32
    wm2 = p["mlp_w2"].T.astype(bf16)                           # (4C, C)
    wh1 = p["head_w1"].T.astype(bf16)                          # (C, C)
    vecs = jnp.stack([
        p["conv_b"], p["g_pe"], p["b_pe"], p["g_n1"], p["b_n1"],
        p["out_proj_b"], p["g_n2"], p["b_n2"], p["mlp_b2"],
        p["head_b1"], p["head_w2"].reshape(C),
        jnp.broadcast_to(p["head_b2"], (C,)),
    ], axis=0)                                                 # (12, C) f32
    return (wproj, wqkv, bqkv, wo, wm1, bm1, wm2, wh1, vecs)


def run_fused(patches_pad, weights, mask, gath, tail, batch, seq, howo):
    bl, p_pad = patches_pad.shape
    inputs = (patches_pad,) + weights + (mask, gath, tail)
    in_specs = [pl.BlockSpec(a.shape, lambda i: (0, 0)) for a in inputs]
    out_shape = (jax.ShapeDtypeStruct((batch, howo), jnp.float32),
                 jax.ShapeDtypeStruct((batch, seq), jnp.float32))
    out_specs = [pl.BlockSpec((batch, howo), lambda i: (0, 0)),
                 pl.BlockSpec((batch, seq), lambda i: (0, 0))]

    C = EMBED_DIM
    n = NUM_HEADS * bl
    flops = 2 * (bl * p_pad * C + bl * C * 3 * C + 2 * n * n * HEAD_DIM
                 + bl * C * C + 2 * bl * C * MLP_HIDDEN + bl * C * C + bl * C
                 + batch * bl * (seq + howo))
    transcend = n * n + bl * MLP_HIDDEN + 6 * bl
    bytes_acc = int(sum(int(np.prod(a.shape)) * a.dtype.itemsize for a in inputs)
                    + 4 * batch * (howo + seq))

    return pl.pallas_call(
        fused_model_kernel,
        out_shape=out_shape,
        grid_spec=pltpu.PrefetchScalarGridSpec(
            num_scalar_prefetch=0,
            grid=(1,),                        # whole batch folded into one step
            in_specs=in_specs,
            out_specs=out_specs,
        ),
        compiler_params=pltpu.CompilerParams(
            dimension_semantics=("arbitrary",)),
        cost_estimate=pl.CostEstimate(flops=int(flops),
                                      transcendentals=int(transcend),
                                      bytes_accessed=bytes_acc),
    )(*inputs)


def model_forward(x, params):
    B, Cin, Himg, Wimg = x.shape
    ps = PATCH
    H, W = Himg // ps, Wimg // ps
    L = H * W
    Ho, Wo = H * ps, W * ps
    P = Cin * ps * ps
    P_pad = ((P + 127) // 128) * 128
    # NCHW -> (B*L, Cin*ps*ps) patches (Conv2d weight flattening order),
    # zero-padded on the feature dim so the matmul K dim is a full lane tile.
    patches = (x.reshape(B, Cin, H, ps, W, ps)
                 .transpose(0, 2, 4, 1, 3, 5)
                 .reshape(B * L, P))
    patches = jnp.pad(patches, ((0, 0), (0, P_pad - P)))

    weights = _kernel_weights(params, P_pad)

    # Precomputed constants (no in-kernel iota, one merged tail matmul):
    # block-diagonal additive attention mask over (head, batch) groups of L.
    n = NUM_HEADS * B * L
    grp = np.arange(n) // L
    mask = jnp.asarray(
        np.where(grp[:, None] == grp[None, :], 0.0, -1e9).astype(np.float32))
    # (B, BL) gather matrix selecting each batch's L rows.
    gath = jnp.asarray(
        (np.arange(B * L)[None, :] // L == np.arange(B)[:, None])
        .astype(np.float32))
    # Separable bilinear upsample folded into one (L, Ho*Wo) matrix
    # (kron(A_h, A_w)).  TODO(synk): keep it separable for non-toy image sizes.
    kup = np.kron(bilinear_matrix(H, Ho), bilinear_matrix(W, Wo)).T   # (L, Ho*Wo)
    scat = (np.arange(B * L)[:, None] % L
            == np.arange(L)[None, :]).astype(np.float32)              # (BL, L)
    tail = jnp.asarray(
        np.concatenate([np.tile(kup, (B, 1)), scat], axis=1).astype(np.float32))

    up_flat, logits = run_fused(patches, weights, mask, gath, tail,
                                B, L, Ho * Wo)                  # (B,Ho*Wo), (B,L)
    heat_up = up_flat.reshape(B, 1, Ho, Wo)
    # nn.Softmax() on the 4-D (B,1,Ho,Wo) tensor acts on dim=1 (size 1), so the
    # result is exactly 1 everywhere; skip the dead exp/div.
    probs = jnp.ones_like(heat_up)
    return probs, heat_up, logits


# ----------------------- pure-JAX reference (for checking) -----------------------

def reference_head(x, p):
    B, Cin, Himg, Wimg = x.shape
    ps, C = PATCH, EMBED_DIM
    H, W = Himg // ps, Wimg // ps
    L = H * W
    patches = (x.reshape(B, Cin, H, ps, W, ps)
                 .transpose(0, 2, 4, 1, 3, 5)
                 .reshape(B, L, Cin * ps * ps))

    def ln(t, g, b):
        mu = t.mean(-1, keepdims=True)
        var = ((t - mu) ** 2).mean(-1, keepdims=True)
        return (t - mu) / jnp.sqrt(var + LN_EPS) * g + b

    z = patches @ p["conv_w"].reshape(C, -1).T + p["conv_b"]
    z = ln(z, p["g_pe"], p["b_pe"])
    y = ln(z, p["g_n1"], p["b_n1"])
    qkv = y @ p["in_proj_w"].T + p["in_proj_b"]
    q, k, v = jnp.split(qkv, 3, axis=-1)
    q = q.reshape(B, L, NUM_HEADS, HEAD_DIM).transpose(0, 2, 1, 3)
    k = k.reshape(B, L, NUM_HEADS, HEAD_DIM).transpose(0, 2, 1, 3)
    v = v.reshape(B, L, NUM_HEADS, HEAD_DIM).transpose(0, 2, 1, 3)
    s = jnp.einsum("bhqd,bhkd->bhqk", q, k) / jnp.sqrt(jnp.float32(HEAD_DIM))
    a = jnp.einsum("bhqk,bhkd->bhqd", jax.nn.softmax(s, axis=-1), v)
    a = a.transpose(0, 2, 1, 3).reshape(B, L, C)
    a = a @ p["out_proj_w"].T + p["out_proj_b"]
    z = z + a
    y = ln(z, p["g_n2"], p["b_n2"])
    y = y @ p["mlp_w1"].T + p["mlp_b1"]
    y = jax.nn.gelu(y, approximate=False)
    y = y @ p["mlp_w2"].T + p["mlp_b2"]
    z = z + y
    h1 = jnp.maximum(z @ p["head_w1"].T + p["head_b1"], 0.0)
    return h1 @ p["head_w2"].T + p["head_b2"]                      # (B, L, 1)


if __name__ == "__main__":
    key = jax.random.PRNGKey(0)
    k_x, k_p = jax.random.split(key)
    x = jax.random.normal(k_x, (2, IN_CHANS, 16, 16), dtype=jnp.float32)
    params = init_params(k_p)

    probs, heat_up, logits = jax.jit(model_forward)(x, params)
    probs = jax.block_until_ready(probs)

    assert probs.shape == (2, 1, 16, 16), probs.shape
    # singleton-channel softmax => all ones
    assert np.allclose(np.asarray(probs), 1.0, atol=1e-6)

    # Check the fused Pallas pipeline against a pure-f32 JAX reference.
    # Tolerance loosened for bf16 matmul operands, the EUP approximate
    # reciprocal in the softmax, and the tanh-form GELU (all documented above).
    ref_logits = reference_head(x, params)                         # (B, L, 1)
    np.testing.assert_allclose(np.asarray(logits),
                               np.asarray(ref_logits)[..., 0],
                               rtol=2e-2, atol=1e-2)
    A_h = bilinear_matrix(4, 16)
    A_w = bilinear_matrix(4, 16)
    ref_up = np.einsum("oh,bhw,pw->bop", A_h,
                       np.asarray(ref_logits).reshape(2, 4, 4), A_w)
    np.testing.assert_allclose(np.asarray(heat_up)[:, 0], ref_up,
                               rtol=2e-2, atol=1e-2)
    print("KERNEL_OK")
</pallas_src>

<mosaic_0001>
module attributes {stable_mosaic.version = 11 : i64} {
  func.func @fused_model_kernel(%arg0: i32, %arg1: memref<32x128xf32, #tpu.memory_space<vmem>>, %arg2: memref<128x96xbf16, #tpu.memory_space<vmem>>, %arg3: memref<96x288xbf16, #tpu.memory_space<vmem>>, %arg4: memref<1x288xf32, #tpu.memory_space<vmem>>, %arg5: memref<96x96xbf16, #tpu.memory_space<vmem>>, %arg6: memref<96x384xbf16, #tpu.memory_space<vmem>>, %arg7: memref<1x384xf32, #tpu.memory_space<vmem>>, %arg8: memref<384x96xbf16, #tpu.memory_space<vmem>>, %arg9: memref<96x96xbf16, #tpu.memory_space<vmem>>, %arg10: memref<12x96xf32, #tpu.memory_space<vmem>>, %arg11: memref<96x96xf32, #tpu.memory_space<vmem>>, %arg12: memref<2x32xf32, #tpu.memory_space<vmem>>, %arg13: memref<32x272xf32, #tpu.memory_space<vmem>>, %arg14: memref<2x256xf32, #tpu.memory_space<vmem>>, %arg15: memref<2x16xf32, #tpu.memory_space<vmem>>) attributes {dimension_semantics = [#tpu.dimension_semantics<arbitrary>], iteration_bounds = array<i64: 1>, scalar_prefetch = 0 : i64, scratch_operands = 0 : i64, tpu.core_type = #tpu.core_type<tc>, window_params = [{pipeline_mode = #tpu.pipeline_mode<synchronous>, transform_indices = @transform_0, window_bounds = array<i64: 32, 128>}, {pipeline_mode = #tpu.pipeline_mode<synchronous>, transform_indices = @transform_1, window_bounds = array<i64: 128, 96>}, {pipeline_mode = #tpu.pipeline_mode<synchronous>, transform_indices = @transform_2, window_bounds = array<i64: 96, 288>}, {pipeline_mode = #tpu.pipeline_mode<synchronous>, transform_indices = @transform_3, window_bounds = array<i64: 1, 288>}, {pipeline_mode = #tpu.pipeline_mode<synchronous>, transform_indices = @transform_4, window_bounds = array<i64: 96, 96>}, {pipeline_mode = #tpu.pipeline_mode<synchronous>, transform_indices = @transform_5, window_bounds = array<i64: 96, 384>}, {pipeline_mode = #tpu.pipeline_mode<synchronous>, transform_indices = @transform_6, window_bounds = array<i64: 1, 384>}, {pipeline_mode = #tpu.pipeline_mode<synchronous>, transform_indices = @transform_7, window_bounds = array<i64: 384, 96>}, {pipeline_mode = #tpu.pipeline_mode<synchronous>, transform_indices = @transform_8, window_bounds = array<i64: 96, 96>}, {pipeline_mode = #tpu.pipeline_mode<synchronous>, transform_indices = @transform_9, window_bounds = array<i64: 12, 96>}, {pipeline_mode = #tpu.pipeline_mode<synchronous>, transform_indices = @transform_10, window_bounds = array<i64: 96, 96>}, {pipeline_mode = #tpu.pipeline_mode<synchronous>, transform_indices = @transform_11, window_bounds = array<i64: 2, 32>}, {pipeline_mode = #tpu.pipeline_mode<synchronous>, transform_indices = @transform_12, window_bounds = array<i64: 32, 272>}, {pipeline_mode = #tpu.pipeline_mode<synchronous>, transform_indices = @transform_13, window_bounds = array<i64: 2, 256>}, {pipeline_mode = #tpu.pipeline_mode<synchronous>, transform_indices = @transform_14, window_bounds = array<i64: 2, 16>}]} {
    %c0 = arith.constant 0 : index
    %c0_0 = arith.constant 0 : index
    %0 = vector.load %arg10[%c0, %c0_0] : memref<12x96xf32, #tpu.memory_space<vmem>>, vector<1x96xf32>
    %c1 = arith.constant 1 : index
    %c0_1 = arith.constant 0 : index
    %1 = vector.load %arg10[%c1, %c0_1] : memref<12x96xf32, #tpu.memory_space<vmem>>, vector<1x96xf32>
    %c2 = arith.constant 2 : index
    %c0_2 = arith.constant 0 : index
    %2 = vector.load %arg10[%c2, %c0_2] : memref<12x96xf32, #tpu.memory_space<vmem>>, vector<1x96xf32>
    %c3 = arith.constant 3 : index
    %c0_3 = arith.constant 0 : index
    %3 = vector.load %arg10[%c3, %c0_3] : memref<12x96xf32, #tpu.memory_space<vmem>>, vector<1x96xf32>
    %c4 = arith.constant 4 : index
    %c0_4 = arith.constant 0 : index
    %4 = vector.load %arg10[%c4, %c0_4] : memref<12x96xf32, #tpu.memory_space<vmem>>, vector<1x96xf32>
    %c5 = arith.constant 5 : index
    %c0_5 = arith.constant 0 : index
    %5 = vector.load %arg10[%c5, %c0_5] : memref<12x96xf32, #tpu.memory_space<vmem>>, vector<1x96xf32>
    %c6 = arith.constant 6 : index
    %c0_6 = arith.constant 0 : index
    %6 = vector.load %arg10[%c6, %c0_6] : memref<12x96xf32, #tpu.memory_space<vmem>>, vector<1x96xf32>
    %c7 = arith.constant 7 : index
    %c0_7 = arith.constant 0 : index
    %7 = vector.load %arg10[%c7, %c0_7] : memref<12x96xf32, #tpu.memory_space<vmem>>, vector<1x96xf32>
    %c8 = arith.constant 8 : index
    %c0_8 = arith.constant 0 : index
    %8 = vector.load %arg10[%c8, %c0_8] : memref<12x96xf32, #tpu.memory_space<vmem>>, vector<1x96xf32>
    %c9 = arith.constant 9 : index
    %c0_9 = arith.constant 0 : index
    %9 = vector.load %arg10[%c9, %c0_9] : memref<12x96xf32, #tpu.memory_space<vmem>>, vector<1x96xf32>
    %c10 = arith.constant 10 : index
    %c0_10 = arith.constant 0 : index
    %10 = vector.load %arg10[%c10, %c0_10] : memref<12x96xf32, #tpu.memory_space<vmem>>, vector<1x96xf32>
    %c11 = arith.constant 11 : index
    %c0_11 = arith.constant 0 : index
    %11 = vector.load %arg10[%c11, %c0_11] : memref<12x96xf32, #tpu.memory_space<vmem>>, vector<1x1xf32>
    %c0_12 = arith.constant 0 : index
    %c0_13 = arith.constant 0 : index
    %12 = vector.load %arg1[%c0_12, %c0_13] : memref<32x128xf32, #tpu.memory_space<vmem>>, vector<32x128xf32>
    %13 = arith.truncf %12 : vector<32x128xf32> to vector<32x128xbf16>
    %c0_14 = arith.constant 0 : index
    %c0_15 = arith.constant 0 : index
    %14 = vector.load %arg2[%c0_14, %c0_15] : memref<128x96xbf16, #tpu.memory_space<vmem>>, vector<128x96xbf16>
    %cst = arith.constant dense<0.000000e+00> : vector<32x96xf32>
    %15 = tpu.matmul %13, %14, %cst {dimension_numbers = #tpu.dot_dimension_numbers<[1], [0], [0], [1], [0, 0, 1, 1], [], []>} : vector<32x128xbf16>, vector<128x96xbf16>, vector<32x96xf32> -> vector<32x96xf32>
    %16 = vector.broadcast %0 : vector<1x96xf32> to vector<32x96xf32>
    %17 = arith.addf %15, %16 : vector<32x96xf32>
    %cst_16 = arith.constant dense<0.000000e+00> : vector<32xf32>
    %18 = vector.multi_reduction <add>, %17, %cst_16 [1] : vector<32x96xf32> to vector<32xf32>
    %19 = vector.shape_cast %18 : vector<32xf32> to vector<32x1xf32>
    %cst_17 = arith.constant 9.600000e+01 : f32
    %20 = vector.broadcast %cst_17 : f32 to vector<32x1xf32>
    %21 = arith.divf %19, %20 : vector<32x1xf32>
    %22 = arith.mulf %17, %17 : vector<32x96xf32>
    %cst_18 = arith.constant dense<0.000000e+00> : vector<32xf32>
    %23 = vector.multi_reduction <add>, %22, %cst_18 [1] : vector<32x96xf32> to vector<32xf32>
    %24 = vector.shape_cast %23 : vector<32xf32> to vector<32x1xf32>
    %cst_19 = arith.constant 9.600000e+01 : f32
    %25 = vector.broadcast %cst_19 : f32 to vector<32x1xf32>
    %26 = arith.divf %24, %25 : vector<32x1xf32>
    %27 = arith.mulf %21, %21 : vector<32x1xf32>
    %28 = arith.subf %26, %27 : vector<32x1xf32>
    %29 = vector.broadcast %21 : vector<32x1xf32> to vector<32x96xf32>
    %30 = arith.subf %17, %29 : vector<32x96xf32>
    %cst_20 = arith.constant 9.99999974E-6 : f32
    %31 = vector.broadcast %cst_20 : f32 to vector<32x1xf32>
    %32 = arith.addf %28, %31 : vector<32x1xf32>
    %33 = math.rsqrt %32 : vector<32x1xf32>
    %34 = vector.broadcast %33 : vector<32x1xf32> to vector<32x96xf32>
    %35 = arith.mulf %30, %34 : vector<32x96xf32>
    %36 = vector.broadcast %1 : vector<1x96xf32> to vector<32x96xf32>
    %37 = arith.mulf %35, %36 : vector<32x96xf32>
    %38 = vector.broadcast %2 : vector<1x96xf32> to vector<32x96xf32>
    %39 = arith.addf %37, %38 : vector<32x96xf32>
    %cst_21 = arith.constant dense<0.000000e+00> : vector<32xf32>
    %40 = vector.multi_reduction <add>, %39, %cst_21 [1] : vector<32x96xf32> to vector<32xf32>
    %41 = vector.shape_cast %40 : vector<32xf32> to vector<32x1xf32>
    %cst_22 = arith.constant 9.600000e+01 : f32
    %42 = vector.broadcast %cst_22 : f32 to vector<32x1xf32>
    %43 = arith.divf %41, %42 : vector<32x1xf32>
    %44 = arith.mulf %39, %39 : vector<32x96xf32>
    %cst_23 = arith.constant dense<0.000000e+00> : vector<32xf32>
    %45 = vector.multi_reduction <add>, %44, %cst_23 [1] : vector<32x96xf32> to vector<32xf32>
    %46 = vector.shape_cast %45 : vector<32xf32> to vector<32x1xf32>
    %cst_24 = arith.constant 9.600000e+01 : f32
    %47 = vector.broadcast %cst_24 : f32 to vector<32x1xf32>
    %48 = arith.divf %46, %47 : vector<32x1xf32>
    %49 = arith.mulf %43, %43 : vector<32x1xf32>
    %50 = arith.subf %48, %49 : vector<32x1xf32>
    %51 = vector.broadcast %43 : vector<32x1xf32> to vector<32x96xf32>
    %52 = arith.subf %39, %51 : vector<32x96xf32>
    %cst_25 = arith.constant 9.99999974E-6 : f32
    %53 = vector.broadcast %cst_25 : f32 to vector<32x1xf32>
    %54 = arith.addf %50, %53 : vector<32x1xf32>
    %55 = math.rsqrt %54 : vector<32x1xf32>
    %56 = vector.broadcast %55 : vector<32x1xf32> to vector<32x96xf32>
    %57 = arith.mulf %52, %56 : vector<32x96xf32>
    %58 = vector.broadcast %3 : vector<1x96xf32> to vector<32x96xf32>
    %59 = arith.mulf %57, %58 : vector<32x96xf32>
    %60 = vector.broadcast %4 : vector<1x96xf32> to vector<32x96xf32>
    %61 = arith.addf %59, %60 : vector<32x96xf32>
    %62 = arith.truncf %61 : vector<32x96xf32> to vector<32x96xbf16>
    %c0_26 = arith.constant 0 : index
    %c0_27 = arith.constant 0 : index
    %63 = vector.load %arg3[%c0_26, %c0_27] : memref<96x288xbf16, #tpu.memory_space<vmem>>, vector<96x288xbf16>
    %cst_28 = arith.constant dense<0.000000e+00> : vector<32x288xf32>
    %64 = tpu.matmul %62, %63, %cst_28 {dimension_numbers = #tpu.dot_dimension_numbers<[1], [0], [0], [1], [0, 0, 1, 1], [], []>} : vector<32x96xbf16>, vector<96x288xbf16>, vector<32x288xf32> -> vector<32x288xf32>
    %c0_29 = arith.constant 0 : index
    %c0_30 = arith.constant 0 : index
    %65 = vector.load %arg4[%c0_29, %c0_30] : memref<1x288xf32, #tpu.memory_space<vmem>>, vector<1x288xf32>
    %66 = vector.broadcast %65 : vector<1x288xf32> to vector<32x288xf32>
    %67 = arith.addf %64, %66 : vector<32x288xf32>
    %68 = vector.extract_strided_slice %67 {offsets = [0, 0], sizes = [32, 32], strides = [1, 1]} : vector<32x288xf32> to vector<32x32xf32>
    %69 = vector.extract_strided_slice %67 {offsets = [0, 32], sizes = [32, 32], strides = [1, 1]} : vector<32x288xf32> to vector<32x32xf32>
    %70 = vector.extract_strided_slice %67 {offsets = [0, 64], sizes = [32, 32], strides = [1, 1]} : vector<32x288xf32> to vector<32x32xf32>
    %71 = tpu.concatenate %68, %69, %70 in 0 : vector<32x32xf32>, vector<32x32xf32>, vector<32x32xf32> -> vector<96x32xf32>
    %72 = arith.truncf %71 : vector<96x32xf32> to vector<96x32xbf16>
    %73 = vector.extract_strided_slice %67 {offsets = [0, 96], sizes = [32, 32], strides = [1, 1]} : vector<32x288xf32> to vector<32x32xf32>
    %74 = vector.extract_strided_slice %67 {offsets = [0, 128], sizes = [32, 32], strides = [1, 1]} : vector<32x288xf32> to vector<32x32xf32>
    %75 = vector.extract_strided_slice %67 {offsets = [0, 160], sizes = [32, 32], strides = [1, 1]} : vector<32x288xf32> to vector<32x32xf32>
    %76 = tpu.concatenate %73, %74, %75 in 0 : vector<32x32xf32>, vector<32x32xf32>, vector<32x32xf32> -> vector<96x32xf32>
    %77 = arith.truncf %76 : vector<96x32xf32> to vector<96x32xbf16>
    %78 = vector.extract_strided_slice %67 {offsets = [0, 192], sizes = [32, 32], strides = [1, 1]} : vector<32x288xf32> to vector<32x32xf32>
    %79 = vector.extract_strided_slice %67 {offsets = [0, 224], sizes = [32, 32], strides = [1, 1]} : vector<32x288xf32> to vector<32x32xf32>
    %80 = vector.extract_strided_slice %67 {offsets = [0, 256], sizes = [32, 32], strides = [1, 1]} : vector<32x288xf32> to vector<32x32xf32>
    %81 = tpu.concatenate %78, %79, %80 in 0 : vector<32x32xf32>, vector<32x32xf32>, vector<32x32xf32> -> vector<96x32xf32>
    %82 = arith.truncf %81 : vector<96x32xf32> to vector<96x32xbf16>
    %cst_31 = arith.constant dense<0.000000e+00> : vector<96x96xf32>
    %83 = tpu.matmul %72, %77, %cst_31 {dimension_numbers = #tpu.dot_dimension_numbers<[1], [1], [0], [0], [0, 0, 1, 0], [], []>} : vector<96x32xbf16>, vector<96x32xbf16>, vector<96x96xf32> -> vector<96x96xf32>
    %c0_32 = arith.constant 0 : index
    %c0_33 = arith.constant 0 : index
    %84 = vector.load %arg11[%c0_32, %c0_33] : memref<96x96xf32, #tpu.memory_space<vmem>>, vector<96x96xf32>
    %85 = arith.addf %83, %84 : vector<96x96xf32>
    %cst_34 = arith.constant dense<0xFF800000> : vector<96xf32>
    %86 = vector.multi_reduction <maximumf>, %85, %cst_34 [1] : vector<96x96xf32> to vector<96xf32>
    %87 = vector.shape_cast %86 : vector<96xf32> to vector<96x1xf32>
    %88 = vector.broadcast %87 : vector<96x1xf32> to vector<96x96xf32>
    %89 = arith.subf %85, %88 : vector<96x96xf32>
    %90 = math.exp %89 : vector<96x96xf32>
    %cst_35 = arith.constant dense<0.000000e+00> : vector<96xf32>
    %91 = vector.multi_reduction <add>, %90, %cst_35 [1] : vector<96x96xf32> to vector<96xf32>
    %92 = vector.shape_cast %91 : vector<96xf32> to vector<96x1xf32>
    %93 = tpu.reciprocal %92 {approx = true} : vector<96x1xf32> -> vector<96x1xf32>
    %94 = vector.broadcast %93 : vector<96x1xf32> to vector<96x96xf32>
    %95 = arith.mulf %90, %94 : vector<96x96xf32>
    %96 = arith.truncf %95 : vector<96x96xf32> to vector<96x96xbf16>
    %cst_36 = arith.constant dense<0.000000e+00> : vector<96x32xf32>
    %97 = tpu.matmul %96, %82, %cst_36 {dimension_numbers = #tpu.dot_dimension_numbers<[1], [0], [0], [1], [0, 0, 1, 1], [], []>} : vector<96x96xbf16>, vector<96x32xbf16>, vector<96x32xf32> -> vector<96x32xf32>
    %98 = vector.extract_strided_slice %97 {offsets = [0, 0], sizes = [32, 32], strides = [1, 1]} : vector<96x32xf32> to vector<32x32xf32>
    %99 = vector.extract_strided_slice %97 {offsets = [32, 0], sizes = [32, 32], strides = [1, 1]} : vector<96x32xf32> to vector<32x32xf32>
    %100 = vector.extract_strided_slice %97 {offsets = [64, 0], sizes = [32, 32], strides = [1, 1]} : vector<96x32xf32> to vector<32x32xf32>
    %101 = tpu.concatenate %98, %99, %100 in 1 : vector<32x32xf32>, vector<32x32xf32>, vector<32x32xf32> -> vector<32x96xf32>
    %102 = arith.truncf %101 : vector<32x96xf32> to vector<32x96xbf16>
    %c0_37 = arith.constant 0 : index
    %c0_38 = arith.constant 0 : index
    %103 = vector.load %arg5[%c0_37, %c0_38] : memref<96x96xbf16, #tpu.memory_space<vmem>>, vector<96x96xbf16>
    %cst_39 = arith.constant dense<0.000000e+00> : vector<32x96xf32>
    %104 = tpu.matmul %102, %103, %cst_39 {dimension_numbers = #tpu.dot_dimension_numbers<[1], [0], [0], [1], [0, 0, 1, 1], [], []>} : vector<32x96xbf16>, vector<96x96xbf16>, vector<32x96xf32> -> vector<32x96xf32>
    %105 = arith.addf %39, %104 : vector<32x96xf32>
    %106 = vector.broadcast %5 : vector<1x96xf32> to vector<32x96xf32>
    %107 = arith.addf %105, %106 : vector<32x96xf32>
    %cst_40 = arith.constant dense<0.000000e+00> : vector<32xf32>
    %108 = vector.multi_reduction <add>, %107, %cst_40 [1] : vector<32x96xf32> to vector<32xf32>
    %109 = vector.shape_cast %108 : vector<32xf32> to vector<32x1xf32>
    %cst_41 = arith.constant 9.600000e+01 : f32
    %110 = vector.broadcast %cst_41 : f32 to vector<32x1xf32>
    %111 = arith.divf %109, %110 : vector<32x1xf32>
    %112 = arith.mulf %107, %107 : vector<32x96xf32>
    %cst_42 = arith.constant dense<0.000000e+00> : vector<32xf32>
    %113 = vector.multi_reduction <add>, %112, %cst_42 [1] : vector<32x96xf32> to vector<32xf32>
    %114 = vector.shape_cast %113 : vector<32xf32> to vector<32x1xf32>
    %cst_43 = arith.constant 9.600000e+01 : f32
    %115 = vector.broadcast %cst_43 : f32 to vector<32x1xf32>
    %116 = arith.divf %114, %115 : vector<32x1xf32>
    %117 = arith.mulf %111, %111 : vector<32x1xf32>
    %118 = arith.subf %116, %117 : vector<32x1xf32>
    %119 = vector.broadcast %111 : vector<32x1xf32> to vector<32x96xf32>
    %120 = arith.subf %107, %119 : vector<32x96xf32>
    %cst_44 = arith.constant 9.99999974E-6 : f32
    %121 = vector.broadcast %cst_44 : f32 to vector<32x1xf32>
    %122 = arith.addf %118, %121 : vector<32x1xf32>
    %123 = math.rsqrt %122 : vector<32x1xf32>
    %124 = vector.broadcast %123 : vector<32x1xf32> to vector<32x96xf32>
    %125 = arith.mulf %120, %124 : vector<32x96xf32>
    %126 = vector.broadcast %6 : vector<1x96xf32> to vector<32x96xf32>
    %127 = arith.mulf %125, %126 : vector<32x96xf32>
    %128 = vector.broadcast %7 : vector<1x96xf32> to vector<32x96xf32>
    %129 = arith.addf %127, %128 : vector<32x96xf32>
    %130 = arith.truncf %129 : vector<32x96xf32> to vector<32x96xbf16>
    %c0_45 = arith.constant 0 : index
    %c0_46 = arith.constant 0 : index
    %131 = vector.load %arg6[%c0_45, %c0_46] : memref<96x384xbf16, #tpu.memory_space<vmem>>, vector<96x384xbf16>
    %cst_47 = arith.constant dense<0.000000e+00> : vector<32x384xf32>
    %132 = tpu.matmul %130, %131, %cst_47 {dimension_numbers = #tpu.dot_dimension_numbers<[1], [0], [0], [1], [0, 0, 1, 1], [], []>} : vector<32x96xbf16>, vector<96x384xbf16>, vector<32x384xf32> -> vector<32x384xf32>
    %c0_48 = arith.constant 0 : index
    %c0_49 = arith.constant 0 : index
    %133 = vector.load %arg7[%c0_48, %c0_49] : memref<1x384xf32, #tpu.memory_space<vmem>>, vector<1x384xf32>
    %134 = vector.broadcast %133 : vector<1x384xf32> to vector<32x384xf32>
    %135 = arith.addf %132, %134 : vector<32x384xf32>
    %cst_50 = arith.constant 5.000000e-01 : f32
    %136 = vector.broadcast %cst_50 : f32 to vector<32x384xf32>
    %137 = arith.mulf %136, %135 : vector<32x384xf32>
    %cst_51 = arith.constant 4.471500e-02 : f32
    %138 = vector.broadcast %cst_51 : f32 to vector<32x384xf32>
    %139 = arith.mulf %138, %135 : vector<32x384xf32>
    %140 = arith.mulf %139, %135 : vector<32x384xf32>
    %141 = arith.mulf %140, %135 : vector<32x384xf32>
    %142 = arith.addf %135, %141 : vector<32x384xf32>
    %cst_52 = arith.constant 0.797884583 : f32
    %143 = vector.broadcast %cst_52 : f32 to vector<32x384xf32>
    %144 = arith.mulf %143, %142 : vector<32x384xf32>
    %145 = math.tanh %144 : vector<32x384xf32>
    %cst_53 = arith.constant 1.000000e+00 : f32
    %146 = vector.broadcast %cst_53 : f32 to vector<32x384xf32>
    %147 = arith.addf %146, %145 : vector<32x384xf32>
    %148 = arith.mulf %137, %147 : vector<32x384xf32>
    %149 = arith.truncf %148 : vector<32x384xf32> to vector<32x384xbf16>
    %c0_54 = arith.constant 0 : index
    %c0_55 = arith.constant 0 : index
    %150 = vector.load %arg8[%c0_54, %c0_55] : memref<384x96xbf16, #tpu.memory_space<vmem>>, vector<384x96xbf16>
    %cst_56 = arith.constant dense<0.000000e+00> : vector<32x96xf32>
    %151 = tpu.matmul %149, %150, %cst_56 {dimension_numbers = #tpu.dot_dimension_numbers<[1], [0], [0], [1], [0, 0, 1, 1], [], []>} : vector<32x384xbf16>, vector<384x96xbf16>, vector<32x96xf32> -> vector<32x96xf32>
    %152 = arith.addf %107, %151 : vector<32x96xf32>
    %153 = vector.broadcast %8 : vector<1x96xf32> to vector<32x96xf32>
    %154 = arith.addf %152, %153 : vector<32x96xf32>
    %155 = arith.truncf %154 : vector<32x96xf32> to vector<32x96xbf16>
    %c0_57 = arith.constant 0 : index
    %c0_58 = arith.constant 0 : index
    %156 = vector.load %arg9[%c0_57, %c0_58] : memref<96x96xbf16, #tpu.memory_space<vmem>>, vector<96x96xbf16>
    %cst_59 = arith.constant dense<0.000000e+00> : vector<32x96xf32>
    %157 = tpu.matmul %155, %156, %cst_59 {dimension_numbers = #tpu.dot_dimension_numbers<[1], [0], [0], [1], [0, 0, 1, 1], [], []>} : vector<32x96xbf16>, vector<96x96xbf16>, vector<32x96xf32> -> vector<32x96xf32>
    %158 = vector.broadcast %9 : vector<1x96xf32> to vector<32x96xf32>
    %159 = arith.addf %157, %158 : vector<32x96xf32>
    %cst_60 = arith.constant 0.000000e+00 : f32
    %160 = vector.broadcast %cst_60 : f32 to vector<32x96xf32>
    %161 = arith.maximumf %159, %160 : vector<32x96xf32>
    %162 = vector.broadcast %10 : vector<1x96xf32> to vector<32x96xf32>
    %163 = arith.mulf %161, %162 : vector<32x96xf32>
    %cst_61 = arith.constant dense<0.000000e+00> : vector<32xf32>
    %164 = vector.multi_reduction <add>, %163, %cst_61 [1] : vector<32x96xf32> to vector<32xf32>
    %165 = vector.shape_cast %164 : vector<32xf32> to vector<32x1xf32>
    %166 = vector.broadcast %11 : vector<1x1xf32> to vector<32x1xf32>
    %167 = arith.addf %165, %166 : vector<32x1xf32>
    %c0_62 = arith.constant 0 : index
    %c0_63 = arith.constant 0 : index
    %168 = vector.load %arg12[%c0_62, %c0_63] : memref<2x32xf32, #tpu.memory_space<vmem>>, vector<2x32xf32>
    %c0_64 = arith.constant 0 : index
    %c0_65 = arith.constant 0 : index
    %169 = vector.load %arg13[%c0_64, %c0_65] : memref<32x272xf32, #tpu.memory_space<vmem>>, vector<32x272xf32>
    %170 = vector.broadcast %167 : vector<32x1xf32> to vector<32x272xf32>
    %171 = arith.mulf %170, %169 : vector<32x272xf32>
    %cst_66 = arith.constant dense<0.000000e+00> : vector<2x272xf32>
    %172 = tpu.matmul %168, %171, %cst_66 {dimension_numbers = #tpu.dot_dimension_numbers<[1], [0], [0], [1], [0, 0, 1, 1], [], []>} : vector<2x32xf32>, vector<32x272xf32>, vector<2x272xf32> -> vector<2x272xf32>
    %173 = vector.extract_strided_slice %172 {offsets = [0, 0], sizes = [2, 256], strides = [1, 1]} : vector<2x272xf32> to vector<2x256xf32>
    %c0_67 = arith.constant 0 : index
    %c0_68 = arith.constant 0 : index
    %174 = vector.load %arg14[%c0_67, %c0_68] : memref<2x256xf32, #tpu.memory_space<vmem>>, vector<2x256xf32>
    tpu.vector_store %arg14[%c0_67, %c0_68], %173 {strides = array<i32>} : memref<2x256xf32, #tpu.memory_space<vmem>>, vector<2x256xf32>,
    %175 = vector.extract_strided_slice %172 {offsets = [0, 256], sizes = [2, 16], strides = [1, 1]} : vector<2x272xf32> to vector<2x16xf32>
    %c0_69 = arith.constant 0 : index
    %c0_70 = arith.constant 0 : index
    %176 = vector.load %arg15[%c0_69, %c0_70] : memref<2x16xf32, #tpu.memory_space<vmem>>, vector<2x16xf32>
    tpu.vector_store %arg15[%c0_69, %c0_70], %175 {strides = array<i32>} : memref<2x16xf32, #tpu.memory_space<vmem>>, vector<2x16xf32>,
    return
  }
  func.func @transform_0(%arg0: i32) -> (i32, i32) {
    %c0_i32 = arith.constant 0 : i32
    %c0_i32_0 = arith.constant 0 : i32
    %c0_i32_1 = arith.constant 0 : i32
    return %c0_i32, %c0_i32_0 : i32, i32
  }
  func.func @transform_1(%arg0: i32) -> (i32, i32) {
    %c0_i32 = arith.constant 0 : i32
    %c0_i32_0 = arith.constant 0 : i32
    %c0_i32_1 = arith.constant 0 : i32
    return %c0_i32, %c0_i32_0 : i32, i32
  }
  func.func @transform_2(%arg0: i32) -> (i32, i32) {
    %c0_i32 = arith.constant 0 : i32
    %c0_i32_0 = arith.constant 0 : i32
    %c0_i32_1 = arith.constant 0 : i32
    return %c0_i32, %c0_i32_0 : i32, i32
  }
  func.func @transform_3(%arg0: i32) -> (i32, i32) {
    %c0_i32 = arith.constant 0 : i32
    %c0_i32_0 = arith.constant 0 : i32
    %c0_i32_1 = arith.constant 0 : i32
    return %c0_i32, %c0_i32_0 : i32, i32
  }
  func.func @transform_4(%arg0: i32) -> (i32, i32) {
    %c0_i32 = arith.constant 0 : i32
    %c0_i32_0 = arith.constant 0 : i32
    %c0_i32_1 = arith.constant 0 : i32
    return %c0_i32, %c0_i32_0 : i32, i32
  }
  func.func @transform_5(%arg0: i32) -> (i32, i32) {
    %c0_i32 = arith.constant 0 : i32
    %c0_i32_0 = arith.constant 0 : i32
    %c0_i32_1 = arith.constant 0 : i32
    return %c0_i32, %c0_i32_0 : i32, i32
  }
  func.func @transform_6(%arg0: i32) -> (i32, i32) {
    %c0_i32 = arith.constant 0 : i32
    %c0_i32_0 = arith.constant 0 : i32
    %c0_i32_1 = arith.constant 0 : i32
    return %c0_i32, %c0_i32_0 : i32, i32
  }
  func.func @transform_7(%arg0: i32) -> (i32, i32) {
    %c0_i32 = arith.constant 0 : i32
    %c0_i32_0 = arith.constant 0 : i32
    %c0_i32_1 = arith.constant 0 : i32
    return %c0_i32, %c0_i32_0 : i32, i32
  }
  func.func @transform_8(%arg0: i32) -> (i32, i32) {
    %c0_i32 = arith.constant 0 : i32
    %c0_i32_0 = arith.constant 0 : i32
    %c0_i32_1 = arith.constant 0 : i32
    return %c0_i32, %c0_i32_0 : i32, i32
  }
  func.func @transform_9(%arg0: i32) -> (i32, i32) {
    %c0_i32 = arith.constant 0 : i32
    %c0_i32_0 = arith.constant 0 : i32
    %c0_i32_1 = arith.constant 0 : i32
    return %c0_i32, %c0_i32_0 : i32, i32
  }
  func.func @transform_10(%arg0: i32) -> (i32, i32) {
    %c0_i32 = arith.constant 0 : i32
    %c0_i32_0 = arith.constant 0 : i32
    %c0_i32_1 = arith.constant 0 : i32
    return %c0_i32, %c0_i32_0 : i32, i32
  }
  func.func @transform_11(%arg0: i32) -> (i32, i32) {
    %c0_i32 = arith.constant 0 : i32
    %c0_i32_0 = arith.constant 0 : i32
    %c0_i32_1 = arith.constant 0 : i32
    return %c0_i32, %c0_i32_0 : i32, i32
  }
  func.func @transform_12(%arg0: i32) -> (i32, i32) {
    %c0_i32 = arith.constant 0 : i32
    %c0_i32_0 = arith.constant 0 : i32
    %c0_i32_1 = arith.constant 0 : i32
    return %c0_i32, %c0_i32_0 : i32, i32
  }
  func.func @transform_13(%arg0: i32) -> (i32, i32) {
    %c0_i32 = arith.constant 0 : i32
    %c0_i32_0 = arith.constant 0 : i32
    %c0_i32_1 = arith.constant 0 : i32
    return %c0_i32, %c0_i32_0 : i32, i32
  }
  func.func @transform_14(%arg0: i32) -> (i32, i32) {
    %c0_i32 = arith.constant 0 : i32
    %c0_i32_0 = arith.constant 0 : i32
    %c0_i32_1 = arith.constant 0 : i32
    return %c0_i32, %c0_i32_0 : i32, i32
  }
}

</mosaic_0001>

<llo_original>
// kernel: mul.9
$region0: #{mul.9}
  #allocation0 [shape = 's32[1]{0}', space=sflag, size = 0x4, scoped, tag = 'scoped memory for mul.9']
  %s0 = inlined_call_operand.vmem [shape: f32[288], index: 0, kind: input, shape index: {}]
  %s1 = inlined_call_operand.vmem [shape: f32[288], index: 1, kind: input, shape index: {}]
  %s2 = inlined_call_operand.vmem [shape: f32[288], index: 2, kind: output, shape index: {}]
  %v3 = vld [vmem:[%s0] sm:$0x7]
  %v4 = vld [vmem:[%s1] sm:$0x7]
  %5 = xla_tuple %v3, %v4
  %6 = xla_tuple %5
  %v7 = vmul.f32 %v3, %v4
  %8 = xla_tuple %v7
  %9 = vst [vmem:[%s2] sm:$0xf] %v7

// kernel: model_forward.1
$region0: #{model_forward.1}
  #allocation0 [shape = 'u32[]', space=smem, size = 0x4, offset = 0x4, fixed_abs, tag = 'smem constant byte address 0x4 - core index']
  #allocation1 [shape = 'u32[144,128]{1,0:T(1,128)}', space=vmem, size = 0x12000, scoped, tag = 'internal scratch']
  %s0 = inlined_call_operand.vmem [shape: f32[32,128], index: 0, kind: input, shape index: {}]
  %s1 = inlined_call_operand.vmem [shape: bf16[128,96], index: 1, kind: input, shape index: {}]
  %s2 = inlined_call_operand.vmem [shape: bf16[96,288], index: 2, kind: input, shape index: {}]
  %s3 = inlined_call_operand.vmem [shape: f32[1,288], index: 3, kind: input, shape index: {}]
  %s4 = inlined_call_operand.vmem [shape: bf16[96,96], index: 4, kind: input, shape index: {}]
  %s5 = inlined_call_operand.vmem [shape: bf16[96,384], index: 5, kind: input, shape index: {}]
  %s6 = inlined_call_operand.vmem [shape: f32[1,384], index: 6, kind: input, shape index: {}]
  %s7 = inlined_call_operand.vmem [shape: bf16[384,96], index: 7, kind: input, shape index: {}]
  %s8 = inlined_call_operand.vmem [shape: bf16[96,96], index: 8, kind: input, shape index: {}]
  %s9 = inlined_call_operand.vmem [shape: f32[12,96], index: 9, kind: input, shape index: {}]
  %s10 = inlined_call_operand.vmem [shape: f32[96,96], index: 10, kind: input, shape index: {}]
  %s11 = inlined_call_operand.vmem [shape: f32[2,32], index: 11, kind: input, shape index: {}]
  %s12 = inlined_call_operand.vmem [shape: f32[32,272], index: 12, kind: input, shape index: {}]
  %s13 = inlined_call_operand.vmem [shape: f32[2,256], index: 13, kind: output, shape index: {0}]
  %s14 = inlined_call_operand.hbm [shape: f32[2,16], index: 14, kind: output, shape index: {1}]
  %15 = xla_tuple %s13, %s14
  %s16 = sld [smem:[#allocation0]]
  $region70: #{model_forward.1} parent=0
    _
  %s18 = ssub.s32 1, %s16
  %s19 = scalar_select 0, %s18, %s16
  $region1: #{model_forward.1} parent=0
    #allocation2 [shape = 'u8[1024]{0}', space=vmem, size = 0x400, scoped, tag = 'output window, operand 1, single buffered']
    #allocation3 [shape = 's32[1]{0}', space=sflag, size = 0x4, scoped, tag = 'scoped memory for model_forward.1']
    %20 = vsyncpa [#allocation3], 0
    // Predicated region
    $region2: #{model_forward.1} parent=1 // pred_check
      _
    $region3: #{model_forward.1} parent=1 // pred_check_branch
      %22 = sbr.rel (0) target = $region5
    $region4: #{model_forward.1} parent=1 // pred_region
      _
    $region5: #{model_forward.1} parent=1 // pred_fallthru
      _
    // Predicated region
    $region6: #{model_forward.1} parent=1 // pred_check
      _
    $region7: #{model_forward.1} parent=1 // pred_check_branch
      %24 = sbr.rel (0) target = $region9
    $region8: #{model_forward.1} parent=1 // pred_region
      _
    $region9: #{model_forward.1} parent=1 // pred_fallthru
      _
    // Predicated region
    $region10: #{model_forward.1} parent=1 // pred_check
      _
    $region11: #{model_forward.1} parent=1 // pred_check_branch
      %26 = sbr.rel (0) target = $region13
    $region12: #{model_forward.1} parent=1 // pred_region
      _
    $region13: #{model_forward.1} parent=1 // pred_fallthru
      _
    // Predicated region
    $region14: #{model_forward.1} parent=1 // pred_check
      _
    $region15: #{model_forward.1} parent=1 // pred_check_branch
      %28 = sbr.rel (0) target = $region17
    $region16: #{model_forward.1} parent=1 // pred_region
      _
    $region17: #{model_forward.1} parent=1 // pred_fallthru
      _
    // Predicated region
    $region18: #{model_forward.1} parent=1 // pred_check
      _
    $region19: #{model_forward.1} parent=1 // pred_check_branch
      %30 = sbr.rel (0) target = $region21
    $region20: #{model_forward.1} parent=1 // pred_region
      _
    $region21: #{model_forward.1} parent=1 // pred_fallthru
      _
    // Predicated region
    $region22: #{model_forward.1} parent=1 // pred_check
      _
    $region23: #{model_forward.1} parent=1 // pred_check_branch
      %32 = sbr.rel (0) target = $region25
    $region24: #{model_forward.1} parent=1 // pred_region
      _
    $region25: #{model_forward.1} parent=1 // pred_fallthru
      _
    // Predicated region
    $region26: #{model_forward.1} parent=1 // pred_check
      _
    $region27: #{model_forward.1} parent=1 // pred_check_branch
      %34 = sbr.rel (0) target = $region29
    $region28: #{model_forward.1} parent=1 // pred_region
      _
    $region29: #{model_forward.1} parent=1 // pred_fallthru
      _
    // Predicated region
    $region30: #{model_forward.1} parent=1 // pred_check
      _
    $region31: #{model_forward.1} parent=1 // pred_check_branch
      %36 = sbr.rel (0) target = $region33
    $region32: #{model_forward.1} parent=1 // pred_region
      _
    $region33: #{model_forward.1} parent=1 // pred_fallthru
      _
    // Predicated region
    $region34: #{model_forward.1} parent=1 // pred_check
      _
    $region35: #{model_forward.1} parent=1 // pred_check_branch
      %38 = sbr.rel (0) target = $region37
    $region36: #{model_forward.1} parent=1 // pred_region
      _
    $region37: #{model_forward.1} parent=1 // pred_fallthru
      _
    // Predicated region
    $region38: #{model_forward.1} parent=1 // pred_check
      _
    $region39: #{model_forward.1} parent=1 // pred_check_branch
      %40 = sbr.rel (0) target = $region41
    $region40: #{model_forward.1} parent=1 // pred_region
      _
    $region41: #{model_forward.1} parent=1 // pred_fallthru
      _
    // Predicated region
    $region42: #{model_forward.1} parent=1 // pred_check
      _
    $region43: #{model_forward.1} parent=1 // pred_check_branch
      %42 = sbr.rel (0) target = $region45
    $region44: #{model_forward.1} parent=1 // pred_region
      _
    $region45: #{model_forward.1} parent=1 // pred_fallthru
      _
    // Predicated region
    $region46: #{model_forward.1} parent=1 // pred_check
      _
    $region47: #{model_forward.1} parent=1 // pred_check_branch
      %44 = sbr.rel (0) target = $region49
    $region48: #{model_forward.1} parent=1 // pred_region
      _
    $region49: #{model_forward.1} parent=1 // pred_fallthru
      _
    // Predicated region
    $region50: #{model_forward.1} parent=1 // pred_check
      _
    $region51: #{model_forward.1} parent=1 // pred_check_branch
      %46 = sbr.rel (0) target = $region53
    $region52: #{model_forward.1} parent=1 // pred_region
      _
    $region53: #{model_forward.1} parent=1 // pred_fallthru
      _
    %v48 = vld [vmem:[%s9] sm:$0x1]
    %v49 = vld [vmem:[%s9 + $0x1] sm:$0x1]
    %v50 = vld [vmem:[%s9 + $0x2] sm:$0x1]
    %v51 = vld [vmem:[%s9 + $0x3] sm:$0x1]
    %v52 = vld [vmem:[%s9 + $0x4] sm:$0x1]
    %v53 = vld [vmem:[%s9 + $0x5] sm:$0x1]
    %v54 = vld [vmem:[%s9 + $0x6] sm:$0x1]
    %v55 = vld [vmem:[%s9 + $0x7] sm:$0x1]
    %v56 = vld [vmem:[%s9 + $0x8] sm:$0x1]
    %v57 = vld [vmem:[%s9 + $0x9] sm:$0x1]
    %v58 = vld [vmem:[%s9 + $0xa] sm:$0x1]
    %v59 = vld [vmem:[%s9 + $0xb] sm:$0x1]
    %v60 = vld [vmem:[%s0] sm:$0xff]
    %v61 = vld [vmem:[%s0 + $0x8] sm:$0xff]
    %v62 = vld [vmem:[%s0 + $0x10] sm:$0xff]
    %v63 = vld [vmem:[%s0 + $0x18] sm:$0xff]
    %v64 = vpack.c.bf16 %v61, %v60
    %v65 = vpack.c.bf16 %v63, %v62
    %v66 = vld [vmem:[%s1] sm:$0xf]
    %v67 = vld [vmem:[%s1 + $0x4] sm:$0xf]
    %v68 = vld [vmem:[%s1 + $0x8] sm:$0xf]
    %v69 = vld [vmem:[%s1 + $0xc] sm:$0xf]
    %v70 = vld [vmem:[%s1 + $0x10] sm:$0xf]
    %v71 = vld [vmem:[%s1 + $0x14] sm:$0xf]
    %v72 = vld [vmem:[%s1 + $0x18] sm:$0xf]
    %v73 = vld [vmem:[%s1 + $0x1c] sm:$0xf]
    %v74 = vld [vmem:[%s1 + $0x20] sm:$0xf]
    %v75 = vld [vmem:[%s1 + $0x24] sm:$0xf]
    %v76 = vld [vmem:[%s1 + $0x28] sm:$0xf]
    %v77 = vld [vmem:[%s1 + $0x2c] sm:$0xf]
    %v78 = vld [vmem:[%s1 + $0x30] sm:$0xf]
    %v79 = vld [vmem:[%s1 + $0x34] sm:$0xf]
    %v80 = vld [vmem:[%s1 + $0x38] sm:$0xf]
    %v81 = vld [vmem:[%s1 + $0x3c] sm:$0xf]
    %v82 = vlaneseq
    %v83 = vshrl.u32 %v82, 7
    %v84 = vsub.s32 0, %v83
    %v85 = vrot.slane %v48, %v84
    %v102 = vunpack.c.l.b16 %v66
    %v103 = vunpack.c.l.b16 %v67
    %v104 = vunpack.c.l.b16 %v68
    %v105 = vunpack.c.l.b16 %v69
    %v106 = vunpack.c.l.b16 %v70
    %v107 = vunpack.c.l.b16 %v71
    %v108 = vunpack.c.l.b16 %v72
    %v109 = vunpack.c.l.b16 %v73
    %v110 = vunpack.c.l.b16 %v74
    %v111 = vunpack.c.l.b16 %v75
    %v112 = vunpack.c.l.b16 %v76
    %v113 = vunpack.c.l.b16 %v77
    %v114 = vunpack.c.l.b16 %v78
    %v115 = vunpack.c.l.b16 %v79
    %v116 = vunpack.c.l.b16 %v80
    %v117 = vunpack.c.l.b16 %v81
    %v118 = vpack.c.b16 %v103, %v102
    %v119 = vpack.c.b16 %v105, %v104
    %v120 = vpack.c.b16 %v107, %v106
    %v121 = vpack.c.b16 %v109, %v108
    %v122 = vpack.c.b16 %v111, %v110
    %v123 = vpack.c.b16 %v113, %v112
    %v124 = vpack.c.b16 %v115, %v114
    %v125 = vpack.c.b16 %v117, %v116
    %134 = vmatprep.subr.bf16.mxu0 0
    %135 = vmatpush1.bf16.msra.mxu0 %v125
    %136 = vmatprep.subr.bf16.mxu0 0
    %137 = vmatpush1.bf16.msra.mxu0 %v124
    %138 = vmatprep.subr.bf16.mxu0 0
    %139 = vmatpush1.bf16.msra.mxu0 %v123
    %140 = vmatprep.subr.bf16.mxu0 0
    %141 = vmatpush1.bf16.msra.mxu0 %v122
    %142 = vmatprep.subr.bf16.mxu0 0
    %143 = vmatpush1.bf16.msra.mxu0 %v121
    %144 = vmatprep.subr.bf16.mxu0 0
    %145 = vmatpush1.bf16.msra.mxu0 %v120
    %146 = vmatprep.subr.bf16.mxu0 0
    %147 = vmatpush1.bf16.msra.mxu0 %v119
    %148 = vmatprep.subr.bf16.mxu0 0
    %149 = vmatpush1.bf16.msra.mxu0 %v118
    %150 = vmatprep.subr.bf16.mxu0 0
    %151 = vmatpush2.bf16.msra.mxu0 0
    %152 = vmatprep.subr.bf16.mxu0 0
    %153 = vmatpush2.bf16.msra.mxu0 0
    %154 = vmatprep.subr.bf16.mxu0 0
    %155 = vmatpush2.bf16.msra.mxu0 0
    %156 = vmatprep.subr.bf16.mxu0 0
    %157 = vmatpush2.bf16.msra.mxu0 0
    %158 = vmatprep.subr.bf16.mxu0 0
    %159 = vmatpush2.bf16.msra.mxu0 0
    %160 = vmatprep.subr.bf16.mxu0 0
    %161 = vmatpush2.bf16.msra.mxu0 0
    %162 = vmatprep.subr.bf16.mxu0 0
    %163 = vmatpush2.bf16.msra.mxu0 0
    %164 = vmatprep.subr.bf16.mxu0 0
    %165 = vmatpush2.bf16.msra.mxu0 0
    %166 = vmatprep.mubr.bf16.mxu0 0
    %167 = vmatmul.mubr.bf16.gmra.mxu0 %v64
    %v168 = vpop.f32.mrf.mxu0
    %v169 = vadd.f32 %v85, %v168
    %v170 = vpop.f32.mrf.mxu0
    %v171 = vpop.f32.mrf.mxu0
    %v172 = vadd.f32 %v85, %v171
    %v173 = vpop.f32.mrf.mxu0
    %174 = vmatprep.mubr.bf16.mxu0 0
    %175 = vmatmul.mubr.bf16.gmra.mxu0 %v65
    %v176 = vpop.f32.mrf.mxu0
    %v177 = vadd.f32 %v85, %v176
    %v178 = vpop.f32.mrf.mxu0
    %v179 = vpop.f32.mrf.mxu0
    %v180 = vadd.f32 %v85, %v179
    %v181 = vpop.f32.mrf.mxu0
    %182 = vdwg.mxu0
    %vm183 = vcmask 785408
    %v184 = vsel %vm183, %v169, 0.0
    %185 = vadd.xlane.f32.xlu0 %v184
    %v186 = vpop.xlane.xlu0 %185
    %v187 = vsel %vm183, %v172, 0.0
    %188 = vadd.xlane.f32.xlu0 %v187
    %v189 = vpop.xlane.xlu0 %188
    %v190 = vsel %vm183, %v177, 0.0
    %191 = vadd.xlane.f32.xlu0 %v190
    %v192 = vpop.xlane.xlu0 %191
    %v193 = vsel %vm183, %v180, 0.0
    %194 = vadd.xlane.f32.xlu0 %v193
    %v195 = vpop.xlane.xlu0 %194
    %v196 = vrcp.pop 96.0
    %v197 = vmul.f32 %v186, %v196
    %v198 = vmul.f32 %v189, %v196
    %v199 = vmul.f32 %v192, %v196
    %v200 = vmul.f32 %v195, %v196
    %v201 = vmul.f32 %v169, %v169
    %v202 = vmul.f32 %v172, %v172
    %v203 = vmul.f32 %v177, %v177
    %v204 = vmul.f32 %v180, %v180
    %v205 = vsel %vm183, %v201, 0.0
    %206 = vadd.xlane.f32.xlu0 %v205
    %v207 = vpop.xlane.xlu0 %206
    %v208 = vsel %vm183, %v202, 0.0
    %209 = vadd.xlane.f32.xlu0 %v208
    %v210 = vpop.xlane.xlu0 %209
    %v211 = vsel %vm183, %v203, 0.0
    %212 = vadd.xlane.f32.xlu0 %v211
    %v213 = vpop.xlane.xlu0 %212
    %v214 = vsel %vm183, %v204, 0.0
    %215 = vadd.xlane.f32.xlu0 %v214
    %v216 = vpop.xlane.xlu0 %215
    %v217 = vmul.f32 %v207, %v196
    %v218 = vmul.f32 %v210, %v196
    %v219 = vmul.f32 %v213, %v196
    %v220 = vmul.f32 %v216, %v196
    %v221 = vmul.f32 %v197, %v197
    %v222 = vmul.f32 %v198, %v198
    %v223 = vmul.f32 %v199, %v199
    %v224 = vmul.f32 %v200, %v200
    %v225 = vsub.f32 %v217, %v221
    %v226 = vsub.f32 %v218, %v222
    %v227 = vsub.f32 %v219, %v223
    %v228 = vsub.f32 %v220, %v224
    %v229 = vsub.f32 %v169, %v197
    %v230 = vsub.f32 %v172, %v198
    %v231 = vsub.f32 %v177, %v199
    %v232 = vsub.f32 %v180, %v200
    %v233 = vadd.f32 %v225, 1e-05
    %v234 = vadd.f32 %v226, 1e-05
    %v235 = vadd.f32 %v227, 1e-05
    %v236 = vadd.f32 %v228, 1e-05
    %v237 = vrsqrt.pop %v233
    %v238 = vrsqrt.pop %v234
    %v239 = vrsqrt.pop %v235
    %v240 = vrsqrt.pop %v236
    %v241 = vmul.f32 %v229, %v237
    %v242 = vmul.f32 %v230, %v238
    %v243 = vmul.f32 %v231, %v239
    %v244 = vmul.f32 %v232, %v240
    %v245 = vlaneseq
    %v246 = vshrl.u32 %v245, 7
    %v247 = vsub.s32 0, %v246
    %v248 = vrot.slane %v49, %v247
    %v249 = vmul.f32 %v241, %v248
    %v250 = vmul.f32 %v242, %v248
    %v251 = vmul.f32 %v243, %v248
    %v252 = vmul.f32 %v244, %v248
    %v253 = vlaneseq
    %v254 = vshrl.u32 %v253, 7
    %v255 = vsub.s32 0, %v254
    %v256 = vrot.slane %v50, %v255
    %v257 = vadd.f32 %v249, %v256
    %v258 = vadd.f32 %v250, %v256
    %v259 = vadd.f32 %v251, %v256
    %v260 = vadd.f32 %v252, %v256
    %v261 = vsel %vm183, %v257, 0.0
    %262 = vadd.xlane.f32.xlu0 %v261
    %v263 = vpop.xlane.xlu0 %262
    %v264 = vsel %vm183, %v258, 0.0
    %265 = vadd.xlane.f32.xlu0 %v264
    %v266 = vpop.xlane.xlu0 %265
    %v267 = vsel %vm183, %v259, 0.0
    %268 = vadd.xlane.f32.xlu0 %v267
    %v269 = vpop.xlane.xlu0 %268
    %v270 = vsel %vm183, %v260, 0.0
    %271 = vadd.xlane.f32.xlu0 %v270
    %v272 = vpop.xlane.xlu0 %271
    %v273 = vmul.f32 %v263, %v196
    %v274 = vmul.f32 %v266, %v196
    %v275 = vmul.f32 %v269, %v196
    %v276 = vmul.f32 %v272, %v196
    %v277 = vmul.f32 %v257, %v257
    %v278 = vmul.f32 %v258, %v258
    %v279 = vmul.f32 %v259, %v259
    %v280 = vmul.f32 %v260, %v260
    %v281 = vsel %vm183, %v277, 0.0
    %282 = vadd.xlane.f32.xlu0 %v281
    %v283 = vpop.xlane.xlu0 %282
    %v284 = vsel %vm183, %v278, 0.0
    %285 = vadd.xlane.f32.xlu0 %v284
    %v286 = vpop.xlane.xlu0 %285
    %v287 = vsel %vm183, %v279, 0.0
    %288 = vadd.xlane.f32.xlu0 %v287
    %v289 = vpop.xlane.xlu0 %288
    %v290 = vsel %vm183, %v280, 0.0
    %291 = vadd.xlane.f32.xlu0 %v290
    %v292 = vpop.xlane.xlu0 %291
    %v293 = vmul.f32 %v283, %v196
    %v294 = vmul.f32 %v286, %v196
    %v295 = vmul.f32 %v289, %v196
    %v296 = vmul.f32 %v292, %v196
    %v297 = vmul.f32 %v273, %v273
    %v298 = vmul.f32 %v274, %v274
    %v299 = vmul.f32 %v275, %v275
    %v300 = vmul.f32 %v276, %v276
    %v301 = vsub.f32 %v293, %v297
    %v302 = vsub.f32 %v294, %v298
    %v303 = vsub.f32 %v295, %v299
    %v304 = vsub.f32 %v296, %v300
    %v305 = vsub.f32 %v257, %v273
    %v306 = vsub.f32 %v258, %v274
    %v307 = vsub.f32 %v259, %v275
    %v308 = vsub.f32 %v260, %v276
    %v309 = vadd.f32 %v301, 1e-05
    %v310 = vadd.f32 %v302, 1e-05
    %v311 = vadd.f32 %v303, 1e-05
    %v312 = vadd.f32 %v304, 1e-05
    %v313 = vrsqrt.pop %v309
    %v314 = vrsqrt.pop %v310
    %v315 = vrsqrt.pop %v311
    %v316 = vrsqrt.pop %v312
    %v317 = vmul.f32 %v305, %v313
    %v318 = vmul.f32 %v306, %v314
    %v319 = vmul.f32 %v307, %v315
    %v320 = vmul.f32 %v308, %v316
    %v321 = vlaneseq
    %v322 = vshrl.u32 %v321, 7
    %v323 = vsub.s32 0, %v322
    %v324 = vrot.slane %v51, %v323
    %v325 = vmul.f32 %v317, %v324
    %v326 = vmul.f32 %v318, %v324
    %v327 = vmul.f32 %v319, %v324
    %v328 = vmul.f32 %v320, %v324
    %v329 = vlaneseq
    %v330 = vshrl.u32 %v329, 7
    %v331 = vsub.s32 0, %v330
    %v332 = vrot.slane %v52, %v331
    %v333 = vadd.f32 %v325, %v332
    %v334 = vadd.f32 %v326, %v332
    %v335 = vadd.f32 %v327, %v332
    %v336 = vadd.f32 %v328, %v332
    %v337 = vpack.c.bf16 %v334, %v333
    %v338 = vpack.c.bf16 %v336, %v335
    %v339 = vld [vmem:[%s2] sm:$0xff]
    %v340 = vld [vmem:[%s2 + $0x8] sm:$0xf]
    %v341 = vld [vmem:[%s2 + $0xc] sm:$0xff]
    %v342 = vld [vmem:[%s2 + $0x14] sm:$0xf]
    %v343 = vld [vmem:[%s2 + $0x18] sm:$0xff]
    %v344 = vld [vmem:[%s2 + $0x20] sm:$0xf]
    %v345 = vld [vmem:[%s2 + $0x24] sm:$0xff]
    %v346 = vld [vmem:[%s2 + $0x2c] sm:$0xf]
    %v347 = vld [vmem:[%s2 + $0x30] sm:$0xff]
    %v348 = vld [vmem:[%s2 + $0x38] sm:$0xf]
    %v349 = vld [vmem:[%s2 + $0x3c] sm:$0xff]
    %v350 = vld [vmem:[%s2 + $0x44] sm:$0xf]
    %v351 = vld [vmem:[%s2 + $0x48] sm:$0xff]
    %v352 = vld [vmem:[%s2 + $0x50] sm:$0xf]
    %v353 = vld [vmem:[%s2 + $0x54] sm:$0xff]
    %v354 = vld [vmem:[%s2 + $0x5c] sm:$0xf]
    %v355 = vld [vmem:[%s2 + $0x60] sm:$0xff]
    %v356 = vld [vmem:[%s2 + $0x68] sm:$0xf]
    %v357 = vld [vmem:[%s2 + $0x6c] sm:$0xff]
    %v358 = vld [vmem:[%s2 + $0x74] sm:$0xf]
    %v359 = vld [vmem:[%s2 + $0x78] sm:$0xff]
    %v360 = vld [vmem:[%s2 + $0x80] sm:$0xf]
    %v361 = vld [vmem:[%s2 + $0x84] sm:$0xff]
    %v362 = vld [vmem:[%s2 + $0x8c] sm:$0xf]
    %v363 = vld [vmem:[%s3] sm:$0x7]
    %v365 = vlaneseq
    %v366 = vshrl.u32 %v365, 7
    %v367 = vsub.s32 0, %v366
    %v368 = vrot.slane %v363, %v367
    %v369 = vlaneseq
    %v370 = vshrl.u32 %v369, 7
    %v371 = vsub.s32 1, %v370
    %v372 = vrot.slane %v363, %v371
    %v373 = vlaneseq
    %v374 = vshrl.u32 %v373, 7
    %v375 = vsub.s32 2, %v374
    %v376 = vrot.slane %v363, %v375
    %v404 = vunpack.c.l.b16 %v339
    %v405 = vunpack.c.h.b16 %v339
    %v406 = vunpack.c.l.b16 %v340
    %v407 = vunpack.c.l.b16 %v341
    %v408 = vunpack.c.h.b16 %v341
    %v409 = vunpack.c.l.b16 %v342
    %v410 = vunpack.c.l.b16 %v343
    %v411 = vunpack.c.h.b16 %v343
    %v412 = vunpack.c.l.b16 %v344
    %v413 = vunpack.c.l.b16 %v345
    %v414 = vunpack.c.h.b16 %v345
    %v415 = vunpack.c.l.b16 %v346
    %v416 = vunpack.c.l.b16 %v347
    %v417 = vunpack.c.h.b16 %v347
    %v418 = vunpack.c.l.b16 %v348
    %v419 = vunpack.c.l.b16 %v349
    %v420 = vunpack.c.h.b16 %v349
    %v421 = vunpack.c.l.b16 %v350
    %v422 = vunpack.c.l.b16 %v351
    %v423 = vunpack.c.h.b16 %v351
    %v424 = vunpack.c.l.b16 %v352
    %v425 = vunpack.c.l.b16 %v353
    %v426 = vunpack.c.h.b16 %v353
    %v427 = vunpack.c.l.b16 %v354
    %v428 = vunpack.c.l.b16 %v355
    %v429 = vunpack.c.h.b16 %v355
    %v430 = vunpack.c.l.b16 %v356
    %v431 = vunpack.c.l.b16 %v357
    %v432 = vunpack.c.h.b16 %v357
    %v433 = vunpack.c.l.b16 %v358
    %v434 = vunpack.c.l.b16 %v359
    %v435 = vunpack.c.h.b16 %v359
    %v436 = vunpack.c.l.b16 %v360
    %v437 = vunpack.c.l.b16 %v361
    %v438 = vunpack.c.h.b16 %v361
    %v439 = vunpack.c.l.b16 %v362
    %v440 = vpack.c.b16 %v407, %v404
    %v441 = vpack.c.b16 %v408, %v405
    %v442 = vpack.c.b16 %v409, %v406
    %v443 = vpack.c.b16 %v413, %v410
    %v444 = vpack.c.b16 %v414, %v411
    %v445 = vpack.c.b16 %v415, %v412
    %v446 = vpack.c.b16 %v419, %v416
    %v447 = vpack.c.b16 %v420, %v417
    %v448 = vpack.c.b16 %v421, %v418
    %v449 = vpack.c.b16 %v425, %v422
    %v450 = vpack.c.b16 %v426, %v423
    %v451 = vpack.c.b16 %v427, %v424
    %v452 = vpack.c.b16 %v431, %v428
    %v453 = vpack.c.b16 %v432, %v429
    %v454 = vpack.c.b16 %v433, %v430
    %v455 = vpack.c.b16 %v437, %v434
    %v456 = vpack.c.b16 %v438, %v435
    %v457 = vpack.c.b16 %v439, %v436
    %v477 = vsel %vm183, %v337, 0
    %v480 = vsel %vm183, %v338, 0
    %482 = vmatprep.subr.bf16.mxu0 0
    %483 = vmatpush1.bf16.msra.mxu0 0
    %484 = vmatprep.subr.bf16.mxu0 0
    %485 = vmatpush1.bf16.msra.mxu0 0
    %486 = vmatprep.subr.bf16.mxu0 %v456
    %487 = vmatpush1.bf16.msra.mxu0 %v455
    %488 = vmatprep.subr.bf16.mxu0 %v453
    %489 = vmatpush1.bf16.msra.mxu0 %v452
    %490 = vmatprep.subr.bf16.mxu0 %v450
    %491 = vmatpush1.bf16.msra.mxu0 %v449
    %492 = vmatprep.subr.bf16.mxu0 %v447
    %493 = vmatpush1.bf16.msra.mxu0 %v446
    %494 = vmatprep.subr.bf16.mxu0 %v444
    %495 = vmatpush1.bf16.msra.mxu0 %v443
    %496 = vmatprep.subr.bf16.mxu0 %v441
    %497 = vmatpush1.bf16.msra.mxu0 %v440
    %498 = vmatprep.subr.bf16.mxu0 0
    %499 = vmatpush2.bf16.msra.mxu0 0
    %500 = vmatprep.subr.bf16.mxu0 0
    %501 = vmatpush2.bf16.msra.mxu0 0
    %502 = vmatprep.subr.bf16.mxu0 0
    %503 = vmatpush2.bf16.msra.mxu0 0
    %504 = vmatprep.subr.bf16.mxu0 0
    %505 = vmatpush2.bf16.msra.mxu0 0
    %506 = vmatprep.subr.bf16.mxu0 0
    %507 = vmatpush2.bf16.msra.mxu0 0
    %508 = vmatprep.subr.bf16.mxu0 0
    %509 = vmatpush2.bf16.msra.mxu0 0
    %510 = vmatprep.subr.bf16.mxu0 0
    %511 = vmatpush2.bf16.msra.mxu0 0
    %512 = vmatprep.subr.bf16.mxu0 0
    %513 = vmatpush2.bf16.msra.mxu0 0
    %514 = vmatprep.mubr.bf16.mxu0 0
    %515 = vmatmul.mubr.bf16.gmra.mxu0 %v477
    %v516 = vpop.f32.mrf.mxu0
    %v517 = vadd.f32 %v368, %v516
    %v518 = vpop.f32.mrf.mxu0
    %v519 = vadd.f32 %v372, %v518
    %v520 = vpop.f32.mrf.mxu0
    %v521 = vadd.f32 %v368, %v520
    %v522 = vpop.f32.mrf.mxu0
    %v523 = vadd.f32 %v372, %v522
    %524 = vmatprep.mubr.bf16.mxu0 0
    %525 = vmatmul.mubr.bf16.gmra.mxu0 %v480
    %v526 = vpop.f32.mrf.mxu0
    %v527 = vadd.f32 %v368, %v526
    %v528 = vpop.f32.mrf.mxu0
    %v529 = vadd.f32 %v372, %v528
    %v530 = vpop.f32.mrf.mxu0
    %v531 = vadd.f32 %v368, %v530
    %v532 = vpop.f32.mrf.mxu0
    %v533 = vadd.f32 %v372, %v532
    %534 = vdwg.mxu0
    %535 = vmatprep.subr.bf16.mxu0 0
    %536 = vmatpush1.bf16.msra.mxu0 0
    %537 = vmatprep.subr.bf16.mxu0 0
    %538 = vmatpush1.bf16.msra.mxu0 0
    %539 = vmatprep.subr.bf16.mxu0 0
    %540 = vmatpush1.bf16.msra.mxu0 %v457
    %541 = vmatprep.subr.bf16.mxu0 0
    %542 = vmatpush1.bf16.msra.mxu0 %v454
    %543 = vmatprep.subr.bf16.mxu0 0
    %544 = vmatpush1.bf16.msra.mxu0 %v451
    %545 = vmatprep.subr.bf16.mxu0 0
    %546 = vmatpush1.bf16.msra.mxu0 %v448
    %547 = vmatprep.subr.bf16.mxu0 0
    %548 = vmatpush1.bf16.msra.mxu0 %v445
    %549 = vmatprep.subr.bf16.mxu0 0
    %550 = vmatpush1.bf16.msra.mxu0 %v442
    %551 = vmatprep.subr.bf16.mxu0 0
    %552 = vmatpush2.bf16.msra.mxu0 0
    %553 = vmatprep.subr.bf16.mxu0 0
    %554 = vmatpush2.bf16.msra.mxu0 0
    %555 = vmatprep.subr.bf16.mxu0 0
    %556 = vmatpush2.bf16.msra.mxu0 0
    %557 = vmatprep.subr.bf16.mxu0 0
    %558 = vmatpush2.bf16.msra.mxu0 0
    %559 = vmatprep.subr.bf16.mxu0 0
    %560 = vmatpush2.bf16.msra.mxu0 0
    %561 = vmatprep.subr.bf16.mxu0 0
    %562 = vmatpush2.bf16.msra.mxu0 0
    %563 = vmatprep.subr.bf16.mxu0 0
    %564 = vmatpush2.bf16.msra.mxu0 0
    %565 = vmatprep.subr.bf16.mxu0 0
    %566 = vmatpush2.bf16.msra.mxu0 0
    %567 = vmatprep.mubr.bf16.mxu0 0
    %568 = vmatmul.mubr.bf16.gmra.mxu0 %v477
    %v569 = vpop.f32.mrf.mxu0
    %v570 = vadd.f32 %v376, %v569
    %v571 = vpop.f32.mrf.mxu0
    %v572 = vpop.f32.mrf.mxu0
    %v573 = vadd.f32 %v376, %v572
    %v574 = vpop.f32.mrf.mxu0
    %575 = vmatprep.mubr.bf16.mxu0 0
    %576 = vmatmul.mubr.bf16.gmra.mxu0 %v480
    %v577 = vpop.f32.mrf.mxu0
    %v578 = vadd.f32 %v376, %v577
    %v579 = vpop.f32.mrf.mxu0
    %v580 = vpop.f32.mrf.mxu0
    %v581 = vadd.f32 %v376, %v580
    %v582 = vpop.f32.mrf.mxu0
    %583 = vdwg.mxu0
    %588 = vrot.lane.b32.xlu0 %v517, 96
    %v589 = vpop.permute.xlu0 %588
    %590 = vrot.lane.b32.xlu0 %v521, 96
    %v591 = vpop.permute.xlu0 %590
    %592 = vrot.lane.b32.xlu0 %v527, 96
    %v593 = vpop.permute.xlu0 %592
    %594 = vrot.lane.b32.xlu0 %v531, 96
    %v595 = vpop.permute.xlu0 %594
    %600 = vrot.lane.b32.xlu0 %v517, 64
    %v601 = vpop.permute.xlu0 %600
    %602 = vrot.lane.b32.xlu0 %v521, 64
    %v603 = vpop.permute.xlu0 %602
    %604 = vrot.lane.b32.xlu0 %v527, 64
    %v605 = vpop.permute.xlu0 %604
    %606 = vrot.lane.b32.xlu0 %v531, 64
    %v607 = vpop.permute.xlu0 %606
    %v612 = vpack.c.bf16 %v521, %v517
    %v613 = vpack.c.bf16 %v531, %v527
    %v614 = vpack.c.bf16 %v591, %v589
    %v615 = vpack.c.bf16 %v595, %v593
    %v616 = vpack.c.bf16 %v603, %v601
    %v617 = vpack.c.bf16 %v607, %v605
    %622 = vrot.lane.b32.xlu0 %v519, 96
    %v623 = vpop.permute.xlu0 %622
    %624 = vrot.lane.b32.xlu0 %v523, 96
    %v625 = vpop.permute.xlu0 %624
    %626 = vrot.lane.b32.xlu0 %v529, 96
    %v627 = vpop.permute.xlu0 %626
    %628 = vrot.lane.b32.xlu0 %v533, 96
    %v629 = vpop.permute.xlu0 %628
    %634 = vrot.lane.b32.xlu0 %v519, 64
    %v635 = vpop.permute.xlu0 %634
    %636 = vrot.lane.b32.xlu0 %v523, 64
    %v637 = vpop.permute.xlu0 %636
    %638 = vrot.lane.b32.xlu0 %v529, 64
    %v639 = vpop.permute.xlu0 %638
    %640 = vrot.lane.b32.xlu0 %v533, 64
    %v641 = vpop.permute.xlu0 %640
    %v646 = vpack.c.bf16 %v625, %v623
    %v647 = vpack.c.bf16 %v629, %v627
    %v648 = vpack.c.bf16 %v637, %v635
    %v649 = vpack.c.bf16 %v641, %v639
    %654 = vrot.lane.b32.xlu0 %v570, 64
    %v655 = vpop.permute.xlu0 %654
    %656 = vrot.lane.b32.xlu0 %v573, 64
    %v657 = vpop.permute.xlu0 %656
    %658 = vrot.lane.b32.xlu0 %v578, 64
    %v659 = vpop.permute.xlu0 %658
    %660 = vrot.lane.b32.xlu0 %v581, 64
    %v661 = vpop.permute.xlu0 %660
    %v666 = vpack.c.bf16 %v523, %v519
    %v667 = vpack.c.bf16 %v533, %v529
    %v668 = vpack.c.bf16 %v657, %v655
    %v669 = vpack.c.bf16 %v661, %v659
    %v670 = vld [vmem:[%s10] sm:$0xff]
    %v671 = vld [vmem:[%s10 + $0x8] sm:$0xff]
    %v672 = vld [vmem:[%s10 + $0x10] sm:$0xff]
    %v673 = vld [vmem:[%s10 + $0x18] sm:$0xff]
    %v674 = vld [vmem:[%s10 + $0x20] sm:$0xff]
    %v675 = vld [vmem:[%s10 + $0x28] sm:$0xff]
    %v676 = vld [vmem:[%s10 + $0x30] sm:$0xff]
    %v677 = vld [vmem:[%s10 + $0x38] sm:$0xff]
    %v678 = vld [vmem:[%s10 + $0x40] sm:$0xff]
    %v679 = vld [vmem:[%s10 + $0x48] sm:$0xff]
    %v680 = vld [vmem:[%s10 + $0x50] sm:$0xff]
    %v681 = vld [vmem:[%s10 + $0x58] sm:$0xff]
    %688 = vrot.lane.b32.xlu0 %v612, 32
    %v689 = vpop.permute.xlu0 %688
    %690 = vrot.lane.b32.xlu0 %v613, 32
    %v691 = vpop.permute.xlu0 %690
    %692 = vrot.lane.b32.xlu0 %v646, 32
    %v693 = vpop.permute.xlu0 %692
    %694 = vrot.lane.b32.xlu0 %v647, 32
    %v695 = vpop.permute.xlu0 %694
    %696 = vrot.lane.b32.xlu0 %v648, 32
    %v697 = vpop.permute.xlu0 %696
    %698 = vrot.lane.b32.xlu0 %v649, 32
    %v699 = vpop.permute.xlu0 %698
    %vm700 = vcmask 261120
    %v702 = vsel %vm700, %v612, 0
    %v705 = vsel %vm700, %v613, 0
    %v708 = vsel %vm700, %v614, 0
    %v711 = vsel %vm700, %v615, 0
    %v714 = vsel %vm700, %v616, 0
    %v717 = vsel %vm700, %v617, 0
    %v720 = vsel %vm700, %v689, 0
    %v723 = vsel %vm700, %v691, 0
    %v726 = vsel %vm700, %v693, 0
    %v729 = vsel %vm700, %v695, 0
    %v732 = vsel %vm700, %v697, 0
    %v735 = vsel %vm700, %v699, 0
    %737 = vmatprep.subr.bf16.mxu0 0
    %738 = vmatpush1.bf16.xpose.msra.mxu0 0
    %739 = vmatprep.subr.bf16.mxu0 0
    %740 = vmatpush1.bf16.xpose.msra.mxu0 0
    %741 = vmatprep.subr.bf16.mxu0 0
    %742 = vmatpush1.bf16.xpose.msra.mxu0 %v735
    %743 = vmatprep.subr.bf16.mxu0 0
    %744 = vmatpush1.bf16.xpose.msra.mxu0 %v732
    %745 = vmatprep.subr.bf16.mxu0 0
    %746 = vmatpush1.bf16.xpose.msra.mxu0 %v729
    %747 = vmatprep.subr.bf16.mxu0 0
    %748 = vmatpush1.bf16.xpose.msra.mxu0 %v726
    %749 = vmatprep.subr.bf16.mxu0 0
    %750 = vmatpush1.bf16.xpose.msra.mxu0 %v723
    %751 = vmatprep.subr.bf16.mxu0 0
    %752 = vmatpush1.bf16.xpose.msra.mxu0 %v720
    %753 = vmatprep.subr.bf16.mxu0 0
    %754 = vmatpush2.bf16.xpose.msra.mxu0 0
    %755 = vmatprep.subr.bf16.mxu0 0
    %756 = vmatpush2.bf16.xpose.msra.mxu0 0
    %757 = vmatprep.subr.bf16.mxu0 0
    %758 = vmatpush2.bf16.xpose.msra.mxu0 0
    %759 = vmatprep.subr.bf16.mxu0 0
    %760 = vmatpush2.bf16.xpose.msra.mxu0 0
    %761 = vmatprep.subr.bf16.mxu0 0
    %762 = vmatpush2.bf16.xpose.msra.mxu0 0
    %763 = vmatprep.subr.bf16.mxu0 0
    %764 = vmatpush2.bf16.xpose.msra.mxu0 0
    %765 = vmatprep.subr.bf16.mxu0 0
    %766 = vmatpush2.bf16.xpose.msra.mxu0 0
    %767 = vmatprep.subr.bf16.mxu0 0
    %768 = vmatpush2.bf16.xpose.msra.mxu0 0
    %769 = vmatprep.mubr.bf16.mxu0 0
    %770 = vmatmul.mubr.bf16.gmra.mxu0 %v702
    %v771 = vpop.f32.mrf.mxu0
    %v772 = vadd.f32 %v670, %v771
    %v773 = vpop.f32.mrf.mxu0
    %v774 = vpop.f32.mrf.mxu0
    %v775 = vadd.f32 %v671, %v774
    %v776 = vpop.f32.mrf.mxu0
    %777 = vmatprep.mubr.bf16.mxu0 0
    %778 = vmatmul.mubr.bf16.gmra.mxu0 %v705
    %v779 = vpop.f32.mrf.mxu0
    %v780 = vadd.f32 %v672, %v779
    %v781 = vpop.f32.mrf.mxu0
    %v782 = vpop.f32.mrf.mxu0
    %v783 = vadd.f32 %v673, %v782
    %v784 = vpop.f32.mrf.mxu0
    %785 = vmatprep.mubr.bf16.mxu0 0
    %786 = vmatmul.mubr.bf16.gmra.mxu0 %v708
    %v787 = vpop.f32.mrf.mxu0
    %v788 = vadd.f32 %v674, %v787
    %v789 = vpop.f32.mrf.mxu0
    %v790 = vpop.f32.mrf.mxu0
    %v791 = vadd.f32 %v675, %v790
    %v792 = vpop.f32.mrf.mxu0
    %793 = vmatprep.mubr.bf16.mxu0 0
    %794 = vmatmul.mubr.bf16.gmra.mxu0 %v711
    %v795 = vpop.f32.mrf.mxu0
    %v796 = vadd.f32 %v676, %v795
    %v797 = vpop.f32.mrf.mxu0
    %v798 = vpop.f32.mrf.mxu0
    %v799 = vadd.f32 %v677, %v798
    %v800 = vpop.f32.mrf.mxu0
    %801 = vmatprep.mubr.bf16.mxu0 0
    %802 = vmatmul.mubr.bf16.gmra.mxu0 %v714
    %v803 = vpop.f32.mrf.mxu0
    %v804 = vadd.f32 %v678, %v803
    %v805 = vpop.f32.mrf.mxu0
    %v806 = vpop.f32.mrf.mxu0
    %v807 = vadd.f32 %v679, %v806
    %v808 = vpop.f32.mrf.mxu0
    %809 = vmatprep.mubr.bf16.mxu0 0
    %810 = vmatmul.mubr.bf16.gmra.mxu0 %v717
    %v811 = vpop.f32.mrf.mxu0
    %v812 = vadd.f32 %v680, %v811
    %v813 = vpop.f32.mrf.mxu0
    %v814 = vpop.f32.mrf.mxu0
    %v815 = vadd.f32 %v681, %v814
    %v816 = vpop.f32.mrf.mxu0
    %817 = vdwg.mxu0
    %v818 = vsel %vm183, %v772, -inf
    %819 = vmax.xlane.f32.xlu0 %v818
    %v820 = vpop.xlane.xlu0 %819
    %v821 = vsel %vm183, %v775, -inf
    %822 = vmax.xlane.f32.xlu0 %v821
    %v823 = vpop.xlane.xlu0 %822
    %v824 = vsel %vm183, %v780, -inf
    %825 = vmax.xlane.f32.xlu0 %v824
    %v826 = vpop.xlane.xlu0 %825
    %v827 = vsel %vm183, %v783, -inf
    %828 = vmax.xlane.f32.xlu0 %v827
    %v829 = vpop.xlane.xlu0 %828
    %v830 = vsel %vm183, %v788, -inf
    %831 = vmax.xlane.f32.xlu0 %v830
    %v832 = vpop.xlane.xlu0 %831
    %v833 = vsel %vm183, %v791, -inf
    %834 = vmax.xlane.f32.xlu0 %v833
    %v835 = vpop.xlane.xlu0 %834
    %v836 = vsel %vm183, %v796, -inf
    %837 = vmax.xlane.f32.xlu0 %v836
    %v838 = vpop.xlane.xlu0 %837
    %v839 = vsel %vm183, %v799, -inf
    %840 = vmax.xlane.f32.xlu0 %v839
    %v841 = vpop.xlane.xlu0 %840
    %v842 = vsel %vm183, %v804, -inf
    %843 = vmax.xlane.f32.xlu0 %v842
    %v844 = vpop.xlane.xlu0 %843
    %v845 = vsel %vm183, %v807, -inf
    %846 = vmax.xlane.f32.xlu0 %v845
    %v847 = vpop.xlane.xlu0 %846
    %v848 = vsel %vm183, %v812, -inf
    %849 = vmax.xlane.f32.xlu0 %v848
    %v850 = vpop.xlane.xlu0 %849
    %v851 = vsel %vm183, %v815, -inf
    %852 = vmax.xlane.f32.xlu0 %v851
    %v853 = vpop.xlane.xlu0 %852
    %v854 = vsub.f32 %v772, %v820
    %v855 = vsub.f32 %v775, %v823
    %v856 = vsub.f32 %v780, %v826
    %v857 = vsub.f32 %v783, %v829
    %v858 = vsub.f32 %v788, %v832
    %v859 = vsub.f32 %v791, %v835
    %v860 = vsub.f32 %v796, %v838
    %v861 = vsub.f32 %v799, %v841
    %v862 = vsub.f32 %v804, %v844
    %v863 = vsub.f32 %v807, %v847
    %v864 = vsub.f32 %v812, %v850
    %v865 = vsub.f32 %v815, %v853
    %v866 = vmul.f32 %v854, 1.442695
    %v867 = vpow.pop %v866
    %v868 = vmul.f32 %v855, 1.442695
    %v869 = vpow.pop %v868
    %v870 = vmul.f32 %v856, 1.442695
    %v871 = vpow.pop %v870
    %v872 = vmul.f32 %v857, 1.442695
    %v873 = vpow.pop %v872
    %v874 = vmul.f32 %v858, 1.442695
    %v875 = vpow.pop %v874
    %v876 = vmul.f32 %v859, 1.442695
    %v877 = vpow.pop %v876
    %v878 = vmul.f32 %v860, 1.442695
    %v879 = vpow.pop %v878
    %v880 = vmul.f32 %v861, 1.442695
    %v881 = vpow.pop %v880
    %v882 = vmul.f32 %v862, 1.442695
    %v883 = vpow.pop %v882
    %v884 = vmul.f32 %v863, 1.442695
    %v885 = vpow.pop %v884
    %v886 = vmul.f32 %v864, 1.442695
    %v887 = vpow.pop %v886
    %v888 = vmul.f32 %v865, 1.442695
    %v889 = vpow.pop %v888
    %v890 = vsel %vm183, %v867, 0.0
    %891 = vadd.xlane.f32.xlu0 %v890
    %v892 = vpop.xlane.xlu0 %891
    %v893 = vsel %vm183, %v869, 0.0
    %894 = vadd.xlane.f32.xlu0 %v893
    %v895 = vpop.xlane.xlu0 %894
    %v896 = vsel %vm183, %v871, 0.0
    %897 = vadd.xlane.f32.xlu0 %v896
    %v898 = vpop.xlane.xlu0 %897
    %v899 = vsel %vm183, %v873, 0.0
    %900 = vadd.xlane.f32.xlu0 %v899
    %v901 = vpop.xlane.xlu0 %900
    %v902 = vsel %vm183, %v875, 0.0
    %903 = vadd.xlane.f32.xlu0 %v902
    %v904 = vpop.xlane.xlu0 %903
    %v905 = vsel %vm183, %v877, 0.0
    %906 = vadd.xlane.f32.xlu0 %v905
    %v907 = vpop.xlane.xlu0 %906
    %v908 = vsel %vm183, %v879, 0.0
    %909 = vadd.xlane.f32.xlu0 %v908
    %v910 = vpop.xlane.xlu0 %909
    %v911 = vsel %vm183, %v881, 0.0
    %912 = vadd.xlane.f32.xlu0 %v911
    %v913 = vpop.xlane.xlu0 %912
    %v914 = vsel %vm183, %v883, 0.0
    %915 = vadd.xlane.f32.xlu0 %v914
    %v916 = vpop.xlane.xlu0 %915
    %v917 = vsel %vm183, %v885, 0.0
    %918 = vadd.xlane.f32.xlu0 %v917
    %v919 = vpop.xlane.xlu0 %918
    %v920 = vsel %vm183, %v887, 0.0
    %921 = vadd.xlane.f32.xlu0 %v920
    %v922 = vpop.xlane.xlu0 %921
    %v923 = vsel %vm183, %v889, 0.0
    %924 = vadd.xlane.f32.xlu0 %v923
    %v925 = vpop.xlane.xlu0 %924
    %v926 = vrcp.pop %v892
    %v927 = vrcp.pop %v895
    %v928 = vrcp.pop %v898
    %v929 = vrcp.pop %v901
    %v930 = vrcp.pop %v904
    %v931 = vrcp.pop %v907
    %v932 = vrcp.pop %v910
    %v933 = vrcp.pop %v913
    %v934 = vrcp.pop %v916
    %v935 = vrcp.pop %v919
    %v936 = vrcp.pop %v922
    %v937 = vrcp.pop %v925
    %v938 = vmul.f32 %v867, %v926
    %v939 = vmul.f32 %v869, %v927
    %v940 = vmul.f32 %v871, %v928
    %v941 = vmul.f32 %v873, %v929
    %v942 = vmul.f32 %v875, %v930
    %v943 = vmul.f32 %v877, %v931
    %v944 = vmul.f32 %v879, %v932
    %v945 = vmul.f32 %v881, %v933
    %v946 = vmul.f32 %v883, %v934
    %v947 = vmul.f32 %v885, %v935
    %v948 = vmul.f32 %v887, %v936
    %v949 = vmul.f32 %v889, %v937
    %v950 = vpack.c.bf16 %v939, %v938
    %v951 = vpack.c.bf16 %v941, %v940
    %v952 = vpack.c.bf16 %v943, %v942
    %v953 = vpack.c.bf16 %v945, %v944
    %v954 = vpack.c.bf16 %v947, %v946
    %v955 = vpack.c.bf16 %v949, %v948
    %960 = vrot.lane.b32.xlu0 %v666, 64
    %v961 = vpop.permute.xlu0 %960
    %962 = vrot.lane.b32.xlu0 %v667, 64
    %v963 = vpop.permute.xlu0 %962
    %964 = vrot.lane.b32.xlu0 %v646, 64
    %v965 = vpop.permute.xlu0 %964
    %966 = vrot.lane.b32.xlu0 %v647, 64
    %v967 = vpop.permute.xlu0 %966
    %968 = vrot.lane.b32.xlu0 %v668, 64
    %v969 = vpop.permute.xlu0 %968
    %970 = vrot.lane.b32.xlu0 %v669, 64
    %v971 = vpop.permute.xlu0 %970
    %v979 = vsel %vm183, %v950, 0
    %v982 = vsel %vm183, %v951, 0
    %v985 = vsel %vm183, %v952, 0
    %v988 = vsel %vm183, %v953, 0
    %v991 = vsel %vm183, %v954, 0
    %v994 = vsel %vm183, %v955, 0
    %996 = vmatprep.subr.bf16.mxu0 0
    %997 = vmatpush1.bf16.msra.mxu0 0
    %998 = vmatprep.subr.bf16.mxu0 0
    %999 = vmatpush1.bf16.msra.mxu0 0
    %1000 = vmatprep.subr.bf16.mxu0 0
    %1001 = vmatpush1.bf16.msra.mxu0 %v971
    %1002 = vmatprep.subr.bf16.mxu0 0
    %1003 = vmatpush1.bf16.msra.mxu0 %v969
    %1004 = vmatprep.subr.bf16.mxu0 0
    %1005 = vmatpush1.bf16.msra.mxu0 %v967
    %1006 = vmatprep.subr.bf16.mxu0 0
    %1007 = vmatpush1.bf16.msra.mxu0 %v965
    %1008 = vmatprep.subr.bf16.mxu0 0
    %1009 = vmatpush1.bf16.msra.mxu0 %v963
    %1010 = vmatprep.subr.bf16.mxu0 0
    %1011 = vmatpush1.bf16.msra.mxu0 %v961
    %1012 = vmatprep.subr.bf16.mxu0 0
    %1013 = vmatpush2.bf16.msra.mxu0 0
    %1014 = vmatprep.subr.bf16.mxu0 0
    %1015 = vmatpush2.bf16.msra.mxu0 0
    %1016 = vmatprep.subr.bf16.mxu0 0
    %1017 = vmatpush2.bf16.msra.mxu0 0
    %1018 = vmatprep.subr.bf16.mxu0 0
    %1019 = vmatpush2.bf16.msra.mxu0 0
    %1020 = vmatprep.subr.bf16.mxu0 0
    %1021 = vmatpush2.bf16.msra.mxu0 0
    %1022 = vmatprep.subr.bf16.mxu0 0
    %1023 = vmatpush2.bf16.msra.mxu0 0
    %1024 = vmatprep.subr.bf16.mxu0 0
    %1025 = vmatpush2.bf16.msra.mxu0 0
    %1026 = vmatprep.subr.bf16.mxu0 0
    %1027 = vmatpush2.bf16.msra.mxu0 0
    %1028 = vmatprep.mubr.bf16.mxu0 0
    %1029 = vmatmul.mubr.bf16.gmra.mxu0 %v979
    %v1030 = vpop.f32.mrf.mxu0
    %v1031 = vadd.f32 0.0, %v1030
    %v1032 = vpop.f32.mrf.mxu0
    %v1033 = vpop.f32.mrf.mxu0
    %v1034 = vadd.f32 0.0, %v1033
    %v1035 = vpop.f32.mrf.mxu0
    %1036 = vmatprep.mubr.bf16.mxu0 0
    %1037 = vmatmul.mubr.bf16.gmra.mxu0 %v982
    %v1038 = vpop.f32.mrf.mxu0
    %v1039 = vadd.f32 0.0, %v1038
    %v1040 = vpop.f32.mrf.mxu0
    %v1041 = vpop.f32.mrf.mxu0
    %v1042 = vadd.f32 0.0, %v1041
    %v1043 = vpop.f32.mrf.mxu0
    %1044 = vmatprep.mubr.bf16.mxu0 0
    %1045 = vmatmul.mubr.bf16.gmra.mxu0 %v985
    %v1046 = vpop.f32.mrf.mxu0
    %v1047 = vadd.f32 0.0, %v1046
    %v1048 = vpop.f32.mrf.mxu0
    %v1049 = vpop.f32.mrf.mxu0
    %v1050 = vadd.f32 0.0, %v1049
    %v1051 = vpop.f32.mrf.mxu0
    %1052 = vmatprep.mubr.bf16.mxu0 0
    %1053 = vmatmul.mubr.bf16.gmra.mxu0 %v988
    %v1054 = vpop.f32.mrf.mxu0
    %v1055 = vadd.f32 0.0, %v1054
    %v1056 = vpop.f32.mrf.mxu0
    %v1057 = vpop.f32.mrf.mxu0
    %v1058 = vadd.f32 0.0, %v1057
    %v1059 = vpop.f32.mrf.mxu0
    %1060 = vmatprep.mubr.bf16.mxu0 0
    %1061 = vmatmul.mubr.bf16.gmra.mxu0 %v991
    %v1062 = vpop.f32.mrf.mxu0
    %v1063 = vadd.f32 0.0, %v1062
    %v1064 = vpop.f32.mrf.mxu0
    %v1065 = vpop.f32.mrf.mxu0
    %v1066 = vadd.f32 0.0, %v1065
    %v1067 = vpop.f32.mrf.mxu0
    %1068 = vmatprep.mubr.bf16.mxu0 0
    %1069 = vmatmul.mubr.bf16.gmra.mxu0 %v994
    %v1070 = vpop.f32.mrf.mxu0
    %v1071 = vadd.f32 0.0, %v1070
    %v1072 = vpop.f32.mrf.mxu0
    %v1073 = vpop.f32.mrf.mxu0
    %v1074 = vadd.f32 0.0, %v1073
    %v1075 = vpop.f32.mrf.mxu0
    %1076 = vdwg.mxu0
    %1081 = vrot.lane.b32.xlu0 %v1047, 32
    %v1082 = vpop.permute.xlu0 %1081
    %1083 = vrot.lane.b32.xlu0 %v1050, 32
    %v1084 = vpop.permute.xlu0 %1083
    %1085 = vrot.lane.b32.xlu0 %v1055, 32
    %v1086 = vpop.permute.xlu0 %1085
    %1087 = vrot.lane.b32.xlu0 %v1058, 32
    %v1088 = vpop.permute.xlu0 %1087
    %1097 = vrot.lane.b32.xlu0 %v1063, 64
    %v1098 = vpop.permute.xlu0 %1097
    %1099 = vrot.lane.b32.xlu0 %v1066, 64
    %v1100 = vpop.permute.xlu0 %1099
    %1101 = vrot.lane.b32.xlu0 %v1071, 64
    %v1102 = vpop.permute.xlu0 %1101
    %1103 = vrot.lane.b32.xlu0 %v1074, 64
    %v1104 = vpop.permute.xlu0 %1103
    %v1109 = vsel %vm700, %v1031, %v1082
    %v1110 = vsel %vm700, %v1034, %v1084
    %v1111 = vsel %vm700, %v1039, %v1086
    %v1112 = vsel %vm700, %v1042, %v1088
    %vm1113 = vcmask 523264
    %v1114 = vsel %vm1113, %v1109, %v1098
    %v1115 = vsel %vm1113, %v1110, %v1100
    %v1116 = vsel %vm1113, %v1111, %v1102
    %v1117 = vsel %vm1113, %v1112, %v1104
    %v1118 = vpack.c.bf16 %v1115, %v1114
    %v1119 = vpack.c.bf16 %v1117, %v1116
    %v1120 = vld [vmem:[%s4] sm:$0xf]
    %v1121 = vld [vmem:[%s4 + $0x4] sm:$0xf]
    %v1122 = vld [vmem:[%s4 + $0x8] sm:$0xf]
    %v1123 = vld [vmem:[%s4 + $0xc] sm:$0xf]
    %v1124 = vld [vmem:[%s4 + $0x10] sm:$0xf]
    %v1125 = vld [vmem:[%s4 + $0x14] sm:$0xf]
    %v1126 = vld [vmem:[%s4 + $0x18] sm:$0xf]
    %v1127 = vld [vmem:[%s4 + $0x1c] sm:$0xf]
    %v1128 = vld [vmem:[%s4 + $0x20] sm:$0xf]
    %v1129 = vld [vmem:[%s4 + $0x24] sm:$0xf]
    %v1130 = vld [vmem:[%s4 + $0x28] sm:$0xf]
    %v1131 = vld [vmem:[%s4 + $0x2c] sm:$0xf]
    %v1144 = vunpack.c.l.b16 %v1120
    %v1145 = vunpack.c.l.b16 %v1121
    %v1146 = vunpack.c.l.b16 %v1122
    %v1147 = vunpack.c.l.b16 %v1123
    %v1148 = vunpack.c.l.b16 %v1124
    %v1149 = vunpack.c.l.b16 %v1125
    %v1150 = vunpack.c.l.b16 %v1126
    %v1151 = vunpack.c.l.b16 %v1127
    %v1152 = vunpack.c.l.b16 %v1128
    %v1153 = vunpack.c.l.b16 %v1129
    %v1154 = vunpack.c.l.b16 %v1130
    %v1155 = vunpack.c.l.b16 %v1131
    %v1156 = vpack.c.b16 %v1145, %v1144
    %v1157 = vpack.c.b16 %v1147, %v1146
    %v1158 = vpack.c.b16 %v1149, %v1148
    %v1159 = vpack.c.b16 %v1151, %v1150
    %v1160 = vpack.c.b16 %v1153, %v1152
    %v1161 = vpack.c.b16 %v1155, %v1154
    %v1169 = vsel %vm183, %v1118, 0
    %v1172 = vsel %vm183, %v1119, 0
    %1174 = vmatprep.subr.bf16.mxu0 0
    %1175 = vmatpush1.bf16.msra.mxu0 0
    %1176 = vmatprep.subr.bf16.mxu0 0
    %1177 = vmatpush1.bf16.msra.mxu0 0
    %1178 = vmatprep.subr.bf16.mxu0 0
    %1179 = vmatpush1.bf16.msra.mxu0 %v1161
    %1180 = vmatprep.subr.bf16.mxu0 0
    %1181 = vmatpush1.bf16.msra.mxu0 %v1160
    %1182 = vmatprep.subr.bf16.mxu0 0
    %1183 = vmatpush1.bf16.msra.mxu0 %v1159
    %1184 = vmatprep.subr.bf16.mxu0 0
    %1185 = vmatpush1.bf16.msra.mxu0 %v1158
    %1186 = vmatprep.subr.bf16.mxu0 0
    %1187 = vmatpush1.bf16.msra.mxu0 %v1157
    %1188 = vmatprep.subr.bf16.mxu0 0
    %1189 = vmatpush1.bf16.msra.mxu0 %v1156
    %1190 = vmatprep.subr.bf16.mxu0 0
    %1191 = vmatpush2.bf16.msra.mxu0 0
    %1192 = vmatprep.subr.bf16.mxu0 0
    %1193 = vmatpush2.bf16.msra.mxu0 0
    %1194 = vmatprep.subr.bf16.mxu0 0
    %1195 = vmatpush2.bf16.msra.mxu0 0
    %1196 = vmatprep.subr.bf16.mxu0 0
    %1197 = vmatpush2.bf16.msra.mxu0 0
    %1198 = vmatprep.subr.bf16.mxu0 0
    %1199 = vmatpush2.bf16.msra.mxu0 0
    %1200 = vmatprep.subr.bf16.mxu0 0
    %1201 = vmatpush2.bf16.msra.mxu0 0
    %1202 = vmatprep.subr.bf16.mxu0 0
    %1203 = vmatpush2.bf16.msra.mxu0 0
    %1204 = vmatprep.subr.bf16.mxu0 0
    %1205 = vmatpush2.bf16.msra.mxu0 0
    %1206 = vmatprep.mubr.bf16.mxu0 0
    %1207 = vmatmul.mubr.bf16.gmra.mxu0 %v1169
    %v1208 = vpop.f32.mrf.mxu0
    %v1209 = vadd.f32 0.0, %v1208
    %v1210 = vpop.f32.mrf.mxu0
    %v1211 = vpop.f32.mrf.mxu0
    %v1212 = vadd.f32 0.0, %v1211
    %v1213 = vpop.f32.mrf.mxu0
    %1214 = vmatprep.mubr.bf16.mxu0 0
    %1215 = vmatmul.mubr.bf16.gmra.mxu0 %v1172
    %v1216 = vpop.f32.mrf.mxu0
    %v1217 = vadd.f32 0.0, %v1216
    %v1218 = vpop.f32.mrf.mxu0
    %v1219 = vpop.f32.mrf.mxu0
    %v1220 = vadd.f32 0.0, %v1219
    %v1221 = vpop.f32.mrf.mxu0
    %1222 = vdwg.mxu0
    %v1223 = vadd.f32 %v257, %v1209
    %v1224 = vadd.f32 %v258, %v1212
    %v1225 = vadd.f32 %v259, %v1217
    %v1226 = vadd.f32 %v260, %v1220
    %v1227 = vlaneseq
    %v1228 = vshrl.u32 %v1227, 7
    %v1229 = vsub.s32 0, %v1228
    %v1230 = vrot.slane %v53, %v1229
    %v1231 = vadd.f32 %v1223, %v1230
    %v1232 = vadd.f32 %v1224, %v1230
    %v1233 = vadd.f32 %v1225, %v1230
    %v1234 = vadd.f32 %v1226, %v1230
    %v1235 = vsel %vm183, %v1231, 0.0
    %1236 = vadd.xlane.f32.xlu0 %v1235
    %v1237 = vpop.xlane.xlu0 %1236
    %v1238 = vsel %vm183, %v1232, 0.0
    %1239 = vadd.xlane.f32.xlu0 %v1238
    %v1240 = vpop.xlane.xlu0 %1239
    %v1241 = vsel %vm183, %v1233, 0.0
    %1242 = vadd.xlane.f32.xlu0 %v1241
    %v1243 = vpop.xlane.xlu0 %1242
    %v1244 = vsel %vm183, %v1234, 0.0
    %1245 = vadd.xlane.f32.xlu0 %v1244
    %v1246 = vpop.xlane.xlu0 %1245
    %v1247 = vmul.f32 %v1237, %v196
    %v1248 = vmul.f32 %v1240, %v196
    %v1249 = vmul.f32 %v1243, %v196
    %v1250 = vmul.f32 %v1246, %v196
    %v1251 = vmul.f32 %v1231, %v1231
    %v1252 = vmul.f32 %v1232, %v1232
    %v1253 = vmul.f32 %v1233, %v1233
    %v1254 = vmul.f32 %v1234, %v1234
    %v1255 = vsel %vm183, %v1251, 0.0
    %1256 = vadd.xlane.f32.xlu0 %v1255
    %v1257 = vpop.xlane.xlu0 %1256
    %v1258 = vsel %vm183, %v1252, 0.0
    %1259 = vadd.xlane.f32.xlu0 %v1258
    %v1260 = vpop.xlane.xlu0 %1259
    %v1261 = vsel %vm183, %v1253, 0.0
    %1262 = vadd.xlane.f32.xlu0 %v1261
    %v1263 = vpop.xlane.xlu0 %1262
    %v1264 = vsel %vm183, %v1254, 0.0
    %1265 = vadd.xlane.f32.xlu0 %v1264
    %v1266 = vpop.xlane.xlu0 %1265
    %v1267 = vmul.f32 %v1257, %v196
    %v1268 = vmul.f32 %v1260, %v196
    %v1269 = vmul.f32 %v1263, %v196
    %v1270 = vmul.f32 %v1266, %v196
    %v1271 = vmul.f32 %v1247, %v1247
    %v1272 = vmul.f32 %v1248, %v1248
    %v1273 = vmul.f32 %v1249, %v1249
    %v1274 = vmul.f32 %v1250, %v1250
    %v1275 = vsub.f32 %v1267, %v1271
    %v1276 = vsub.f32 %v1268, %v1272
    %v1277 = vsub.f32 %v1269, %v1273
    %v1278 = vsub.f32 %v1270, %v1274
    %v1279 = vsub.f32 %v1231, %v1247
    %v1280 = vsub.f32 %v1232, %v1248
    %v1281 = vsub.f32 %v1233, %v1249
    %v1282 = vsub.f32 %v1234, %v1250
    %v1283 = vadd.f32 %v1275, 1e-05
    %v1284 = vadd.f32 %v1276, 1e-05
    %v1285 = vadd.f32 %v1277, 1e-05
    %v1286 = vadd.f32 %v1278, 1e-05
    %v1287 = vrsqrt.pop %v1283
    %v1288 = vrsqrt.pop %v1284
    %v1289 = vrsqrt.pop %v1285
    %v1290 = vrsqrt.pop %v1286
    %v1291 = vmul.f32 %v1279, %v1287
    %v1292 = vmul.f32 %v1280, %v1288
    %v1293 = vmul.f32 %v1281, %v1289
    %v1294 = vmul.f32 %v1282, %v1290
    %v1295 = vlaneseq
    %v1296 = vshrl.u32 %v1295, 7
    %v1297 = vsub.s32 0, %v1296
    %v1298 = vrot.slane %v54, %v1297
    %v1299 = vmul.f32 %v1291, %v1298
    %v1300 = vmul.f32 %v1292, %v1298
    %v1301 = vmul.f32 %v1293, %v1298
    %v1302 = vmul.f32 %v1294, %v1298
    %v1303 = vlaneseq
    %v1304 = vshrl.u32 %v1303, 7
    %v1305 = vsub.s32 0, %v1304
    %v1306 = vrot.slane %v55, %v1305
    %v1307 = vadd.f32 %v1299, %v1306
    %v1308 = vadd.f32 %v1300, %v1306
    %v1309 = vadd.f32 %v1301, %v1306
    %v1310 = vadd.f32 %v1302, %v1306
    %v1311 = vpack.c.bf16 %v1308, %v1307
    %v1312 = vpack.c.bf16 %v1310, %v1309
    %v1313 = vld [vmem:[%s5] sm:$0xff]
    %v1314 = vld [vmem:[%s5 + $0x8] sm:$0xf]
    %v1315 = vld [vmem:[%s5 + $0xc] sm:$0xff]
    %v1316 = vld [vmem:[%s5 + $0x14] sm:$0xf]
    %v1317 = vld [vmem:[%s5 + $0x18] sm:$0xff]
    %v1318 = vld [vmem:[%s5 + $0x20] sm:$0xf]
    %v1319 = vld [vmem:[%s5 + $0x24] sm:$0xff]
    %v1320 = vld [vmem:[%s5 + $0x2c] sm:$0xf]
    %v1321 = vld [vmem:[%s5 + $0x30] sm:$0xff]
    %v1322 = vld [vmem:[%s5 + $0x38] sm:$0xf]
    %v1323 = vld [vmem:[%s5 + $0x3c] sm:$0xff]
    %v1324 = vld [vmem:[%s5 + $0x44] sm:$0xf]
    %v1325 = vld [vmem:[%s5 + $0x48] sm:$0xff]
    %v1326 = vld [vmem:[%s5 + $0x50] sm:$0xf]
    %v1327 = vld [vmem:[%s5 + $0x54] sm:$0xff]
    %v1328 = vld [vmem:[%s5 + $0x5c] sm:$0xf]
    %v1329 = vld [vmem:[%s5 + $0x60] sm:$0xff]
    %v1330 = vld [vmem:[%s5 + $0x68] sm:$0xf]
    %v1331 = vld [vmem:[%s5 + $0x6c] sm:$0xff]
    %v1332 = vld [vmem:[%s5 + $0x74] sm:$0xf]
    %v1333 = vld [vmem:[%s5 + $0x78] sm:$0xff]
    %v1334 = vld [vmem:[%s5 + $0x80] sm:$0xf]
    %v1335 = vld [vmem:[%s5 + $0x84] sm:$0xff]
    %v1336 = vld [vmem:[%s5 + $0x8c] sm:$0xf]
    %v1337 = vld [vmem:[%s6] sm:$0x7]
    %v1339 = vlaneseq
    %v1340 = vshrl.u32 %v1339, 7
    %v1341 = vsub.s32 0, %v1340
    %v1342 = vrot.slane %v1337, %v1341
    %v1343 = vlaneseq
    %v1344 = vshrl.u32 %v1343, 7
    %v1345 = vsub.s32 1, %v1344
    %v1346 = vrot.slane %v1337, %v1345
    %v1347 = vlaneseq
    %v1348 = vshrl.u32 %v1347, 7
    %v1349 = vsub.s32 2, %v1348
    %v1350 = vrot.slane %v1337, %v1349
    %v1378 = vunpack.c.l.b16 %v1313
    %v1379 = vunpack.c.h.b16 %v1313
    %v1380 = vunpack.c.l.b16 %v1314
    %v1381 = vunpack.c.l.b16 %v1315
    %v1382 = vunpack.c.h.b16 %v1315
    %v1383 = vunpack.c.l.b16 %v1316
    %v1384 = vunpack.c.l.b16 %v1317
    %v1385 = vunpack.c.h.b16 %v1317
    %v1386 = vunpack.c.l.b16 %v1318
    %v1387 = vunpack.c.l.b16 %v1319
    %v1388 = vunpack.c.h.b16 %v1319
    %v1389 = vunpack.c.l.b16 %v1320
    %v1390 = vunpack.c.l.b16 %v1321
    %v1391 = vunpack.c.h.b16 %v1321
    %v1392 = vunpack.c.l.b16 %v1322
    %v1393 = vunpack.c.l.b16 %v1323
    %v1394 = vunpack.c.h.b16 %v1323
    %v1395 = vunpack.c.l.b16 %v1324
    %v1396 = vunpack.c.l.b16 %v1325
    %v1397 = vunpack.c.h.b16 %v1325
    %v1398 = vunpack.c.l.b16 %v1326
    %v1399 = vunpack.c.l.b16 %v1327
    %v1400 = vunpack.c.h.b16 %v1327
    %v1401 = vunpack.c.l.b16 %v1328
    %v1402 = vunpack.c.l.b16 %v1329
    %v1403 = vunpack.c.h.b16 %v1329
    %v1404 = vunpack.c.l.b16 %v1330
    %v1405 = vunpack.c.l.b16 %v1331
    %v1406 = vunpack.c.h.b16 %v1331
    %v1407 = vunpack.c.l.b16 %v1332
    %v1408 = vunpack.c.l.b16 %v1333
    %v1409 = vunpack.c.h.b16 %v1333
    %v1410 = vunpack.c.l.b16 %v1334
    %v1411 = vunpack.c.l.b16 %v1335
    %v1412 = vunpack.c.h.b16 %v1335
    %v1413 = vunpack.c.l.b16 %v1336
    %v1414 = vpack.c.b16 %v1381, %v1378
    %v1415 = vpack.c.b16 %v1382, %v1379
    %v1416 = vpack.c.b16 %v1383, %v1380
    %v1417 = vpack.c.b16 %v1387, %v1384
    %v1418 = vpack.c.b16 %v1388, %v1385
    %v1419 = vpack.c.b16 %v1389, %v1386
    %v1420 = vpack.c.b16 %v1393, %v1390
    %v1421 = vpack.c.b16 %v1394, %v1391
    %v1422 = vpack.c.b16 %v1395, %v1392
    %v1423 = vpack.c.b16 %v1399, %v1396
    %v1424 = vpack.c.b16 %v1400, %v1397
    %v1425 = vpack.c.b16 %v1401, %v1398
    %v1426 = vpack.c.b16 %v1405, %v1402
    %v1427 = vpack.c.b16 %v1406, %v1403
    %v1428 = vpack.c.b16 %v1407, %v1404
    %v1429 = vpack.c.b16 %v1411, %v1408
    %v1430 = vpack.c.b16 %v1412, %v1409
    %v1431 = vpack.c.b16 %v1413, %v1410
    %v1451 = vsel %vm183, %v1311, 0
    %v1454 = vsel %vm183, %v1312, 0
    %1456 = vmatprep.subr.bf16.mxu0 0
    %1457 = vmatpush1.bf16.msra.mxu0 0
    %1458 = vmatprep.subr.bf16.mxu0 0
    %1459 = vmatpush1.bf16.msra.mxu0 0
    %1460 = vmatprep.subr.bf16.mxu0 %v1430
    %1461 = vmatpush1.bf16.msra.mxu0 %v1429
    %1462 = vmatprep.subr.bf16.mxu0 %v1427
    %1463 = vmatpush1.bf16.msra.mxu0 %v1426
    %1464 = vmatprep.subr.bf16.mxu0 %v1424
    %1465 = vmatpush1.bf16.msra.mxu0 %v1423
    %1466 = vmatprep.subr.bf16.mxu0 %v1421
    %1467 = vmatpush1.bf16.msra.mxu0 %v1420
    %1468 = vmatprep.subr.bf16.mxu0 %v1418
    %1469 = vmatpush1.bf16.msra.mxu0 %v1417
    %1470 = vmatprep.subr.bf16.mxu0 %v1415
    %1471 = vmatpush1.bf16.msra.mxu0 %v1414
    %1472 = vmatprep.subr.bf16.mxu0 0
    %1473 = vmatpush2.bf16.msra.mxu0 0
    %1474 = vmatprep.subr.bf16.mxu0 0
    %1475 = vmatpush2.bf16.msra.mxu0 0
    %1476 = vmatprep.subr.bf16.mxu0 0
    %1477 = vmatpush2.bf16.msra.mxu0 0
    %1478 = vmatprep.subr.bf16.mxu0 0
    %1479 = vmatpush2.bf16.msra.mxu0 0
    %1480 = vmatprep.subr.bf16.mxu0 0
    %1481 = vmatpush2.bf16.msra.mxu0 0
    %1482 = vmatprep.subr.bf16.mxu0 0
    %1483 = vmatpush2.bf16.msra.mxu0 0
    %1484 = vmatprep.subr.bf16.mxu0 0
    %1485 = vmatpush2.bf16.msra.mxu0 0
    %1486 = vmatprep.subr.bf16.mxu0 0
    %1487 = vmatpush2.bf16.msra.mxu0 0
    %1488 = vmatprep.mubr.bf16.mxu0 0
    %1489 = vmatmul.mubr.bf16.gmra.mxu0 %v1451
    %v1490 = vpop.f32.mrf.mxu0
    %v1491 = vadd.f32 %v1342, %v1490
    %v1492 = vpop.f32.mrf.mxu0
    %v1493 = vadd.f32 %v1346, %v1492
    %v1494 = vpop.f32.mrf.mxu0
    %v1495 = vadd.f32 %v1342, %v1494
    %v1496 = vpop.f32.mrf.mxu0
    %v1497 = vadd.f32 %v1346, %v1496
    %1498 = vmatprep.mubr.bf16.mxu0 0
    %1499 = vmatmul.mubr.bf16.gmra.mxu0 %v1454
    %v1500 = vpop.f32.mrf.mxu0
    %v1501 = vadd.f32 %v1342, %v1500
    %v1502 = vpop.f32.mrf.mxu0
    %v1503 = vadd.f32 %v1346, %v1502
    %v1504 = vpop.f32.mrf.mxu0
    %v1505 = vadd.f32 %v1342, %v1504
    %v1506 = vpop.f32.mrf.mxu0
    %v1507 = vadd.f32 %v1346, %v1506
    %1508 = vdwg.mxu0
    %1509 = vmatprep.subr.bf16.mxu0 0
    %1510 = vmatpush1.bf16.msra.mxu0 0
    %1511 = vmatprep.subr.bf16.mxu0 0
    %1512 = vmatpush1.bf16.msra.mxu0 0
    %1513 = vmatprep.subr.bf16.mxu0 0
    %1514 = vmatpush1.bf16.msra.mxu0 %v1431
    %1515 = vmatprep.subr.bf16.mxu0 0
    %1516 = vmatpush1.bf16.msra.mxu0 %v1428
    %1517 = vmatprep.subr.bf16.mxu0 0
    %1518 = vmatpush1.bf16.msra.mxu0 %v1425
    %1519 = vmatprep.subr.bf16.mxu0 0
    %1520 = vmatpush1.bf16.msra.mxu0 %v1422
    %1521 = vmatprep.subr.bf16.mxu0 0
    %1522 = vmatpush1.bf16.msra.mxu0 %v1419
    %1523 = vmatprep.subr.bf16.mxu0 0
    %1524 = vmatpush1.bf16.msra.mxu0 %v1416
    %1525 = vmatprep.subr.bf16.mxu0 0
    %1526 = vmatpush2.bf16.msra.mxu0 0
    %1527 = vmatprep.subr.bf16.mxu0 0
    %1528 = vmatpush2.bf16.msra.mxu0 0
    %1529 = vmatprep.subr.bf16.mxu0 0
    %1530 = vmatpush2.bf16.msra.mxu0 0
    %1531 = vmatprep.subr.bf16.mxu0 0
    %1532 = vmatpush2.bf16.msra.mxu0 0
    %1533 = vmatprep.subr.bf16.mxu0 0
    %1534 = vmatpush2.bf16.msra.mxu0 0
    %1535 = vmatprep.subr.bf16.mxu0 0
    %1536 = vmatpush2.bf16.msra.mxu0 0
    %1537 = vmatprep.subr.bf16.mxu0 0
    %1538 = vmatpush2.bf16.msra.mxu0 0
    %1539 = vmatprep.subr.bf16.mxu0 0
    %1540 = vmatpush2.bf16.msra.mxu0 0
    %1541 = vmatprep.mubr.bf16.mxu0 0
    %1542 = vmatmul.mubr.bf16.gmra.mxu0 %v1451
    %v1543 = vpop.f32.mrf.mxu0
    %v1544 = vadd.f32 %v1350, %v1543
    %v1545 = vpop.f32.mrf.mxu0
    %v1546 = vpop.f32.mrf.mxu0
    %v1547 = vadd.f32 %v1350, %v1546
    %v1548 = vpop.f32.mrf.mxu0
    %1549 = vmatprep.mubr.bf16.mxu0 0
    %1550 = vmatmul.mubr.bf16.gmra.mxu0 %v1454
    %v1551 = vpop.f32.mrf.mxu0
    %v1552 = vadd.f32 %v1350, %v1551
    %v1553 = vpop.f32.mrf.mxu0
    %v1554 = vpop.f32.mrf.mxu0
    %v1555 = vadd.f32 %v1350, %v1554
    %v1556 = vpop.f32.mrf.mxu0
    %1557 = vdwg.mxu0
    %v1558 = vmul.f32 %v1491, 0.5
    %v1559 = vmul.f32 %v1493, 0.5
    %v1560 = vmul.f32 %v1544, 0.5
    %v1561 = vmul.f32 %v1495, 0.5
    %v1562 = vmul.f32 %v1497, 0.5
    %v1563 = vmul.f32 %v1547, 0.5
    %v1564 = vmul.f32 %v1501, 0.5
    %v1565 = vmul.f32 %v1503, 0.5
    %v1566 = vmul.f32 %v1552, 0.5
    %v1567 = vmul.f32 %v1505, 0.5
    %v1568 = vmul.f32 %v1507, 0.5
    %v1569 = vmul.f32 %v1555, 0.5
    %v1570 = vmul.f32 %v1491, 0.044715
    %v1571 = vmul.f32 %v1493, 0.044715
    %v1572 = vmul.f32 %v1544, 0.044715
    %v1573 = vmul.f32 %v1495, 0.044715
    %v1574 = vmul.f32 %v1497, 0.044715
    %v1575 = vmul.f32 %v1547, 0.044715
    %v1576 = vmul.f32 %v1501, 0.044715
    %v1577 = vmul.f32 %v1503, 0.044715
    %v1578 = vmul.f32 %v1552, 0.044715
    %v1579 = vmul.f32 %v1505, 0.044715
    %v1580 = vmul.f32 %v1507, 0.044715
    %v1581 = vmul.f32 %v1555, 0.044715
    %v1582 = vmul.f32 %v1570, %v1491
    %v1583 = vmul.f32 %v1571, %v1493
    %v1584 = vmul.f32 %v1572, %v1544
    %v1585 = vmul.f32 %v1573, %v1495
    %v1586 = vmul.f32 %v1574, %v1497
    %v1587 = vmul.f32 %v1575, %v1547
    %v1588 = vmul.f32 %v1576, %v1501
    %v1589 = vmul.f32 %v1577, %v1503
    %v1590 = vmul.f32 %v1578, %v1552
    %v1591 = vmul.f32 %v1579, %v1505
    %v1592 = vmul.f32 %v1580, %v1507
    %v1593 = vmul.f32 %v1581, %v1555
    %v1594 = vmul.f32 %v1582, %v1491
    %v1595 = vmul.f32 %v1583, %v1493
    %v1596 = vmul.f32 %v1584, %v1544
    %v1597 = vmul.f32 %v1585, %v1495
    %v1598 = vmul.f32 %v1586, %v1497
    %v1599 = vmul.f32 %v1587, %v1547
    %v1600 = vmul.f32 %v1588, %v1501
    %v1601 = vmul.f32 %v1589, %v1503
    %v1602 = vmul.f32 %v1590, %v1552
    %v1603 = vmul.f32 %v1591, %v1505
    %v1604 = vmul.f32 %v1592, %v1507
    %v1605 = vmul.f32 %v1593, %v1555
    %v1606 = vadd.f32 %v1491, %v1594
    %v1607 = vadd.f32 %v1493, %v1595
    %v1608 = vadd.f32 %v1544, %v1596
    %v1609 = vadd.f32 %v1495, %v1597
    %v1610 = vadd.f32 %v1497, %v1598
    %v1611 = vadd.f32 %v1547, %v1599
    %v1612 = vadd.f32 %v1501, %v1600
    %v1613 = vadd.f32 %v1503, %v1601
    %v1614 = vadd.f32 %v1552, %v1602
    %v1615 = vadd.f32 %v1505, %v1603
    %v1616 = vadd.f32 %v1507, %v1604
    %v1617 = vadd.f32 %v1555, %v1605
    %v1618 = vmul.f32 %v1606, 0.7978846
    %v1619 = vmul.f32 %v1607, 0.7978846
    %v1620 = vmul.f32 %v1608, 0.7978846
    %v1621 = vmul.f32 %v1609, 0.7978846
    %v1622 = vmul.f32 %v1610, 0.7978846
    %v1623 = vmul.f32 %v1611, 0.7978846
    %v1624 = vmul.f32 %v1612, 0.7978846
    %v1625 = vmul.f32 %v1613, 0.7978846
    %v1626 = vmul.f32 %v1614, 0.7978846
    %v1627 = vmul.f32 %v1615, 0.7978846
    %v1628 = vmul.f32 %v1616, 0.7978846
    %v1629 = vmul.f32 %v1617, 0.7978846
    %v1630 = vtanh.pop %v1618
    %v1631 = vtanh.pop %v1619
    %v1632 = vtanh.pop %v1620
    %v1633 = vtanh.pop %v1621
    %v1634 = vtanh.pop %v1622
    %v1635 = vtanh.pop %v1623
    %v1636 = vtanh.pop %v1624
    %v1637 = vtanh.pop %v1625
    %v1638 = vtanh.pop %v1626
    %v1639 = vtanh.pop %v1627
    %v1640 = vtanh.pop %v1628
    %v1641 = vtanh.pop %v1629
    %v1642 = vadd.f32 %v1630, 1.0
    %v1643 = vadd.f32 %v1631, 1.0
    %v1644 = vadd.f32 %v1632, 1.0
    %v1645 = vadd.f32 %v1633, 1.0
    %v1646 = vadd.f32 %v1634, 1.0
    %v1647 = vadd.f32 %v1635, 1.0
    %v1648 = vadd.f32 %v1636, 1.0
    %v1649 = vadd.f32 %v1637, 1.0
    %v1650 = vadd.f32 %v1638, 1.0
    %v1651 = vadd.f32 %v1639, 1.0
    %v1652 = vadd.f32 %v1640, 1.0
    %v1653 = vadd.f32 %v1641, 1.0
    %v1654 = vmul.f32 %v1558, %v1642
    %v1655 = vmul.f32 %v1559, %v1643
    %v1656 = vmul.f32 %v1560, %v1644
    %v1657 = vmul.f32 %v1561, %v1645
    %v1658 = vmul.f32 %v1562, %v1646
    %v1659 = vmul.f32 %v1563, %v1647
    %v1660 = vmul.f32 %v1564, %v1648
    %v1661 = vmul.f32 %v1565, %v1649
    %v1662 = vmul.f32 %v1566, %v1650
    %v1663 = vmul.f32 %v1567, %v1651
    %v1664 = vmul.f32 %v1568, %v1652
    %v1665 = vmul.f32 %v1569, %v1653
    %v1666 = vpack.c.bf16 %v1657, %v1654
    %v1667 = vpack.c.bf16 %v1658, %v1655
    %v1668 = vpack.c.bf16 %v1659, %v1656
    %v1669 = vpack.c.bf16 %v1663, %v1660
    %v1670 = vpack.c.bf16 %v1664, %v1661
    %v1671 = vpack.c.bf16 %v1665, %v1662
    %v1672 = vld [vmem:[%s7] sm:$0xf]
    %v1673 = vld [vmem:[%s7 + $0x4] sm:$0xf]
    %v1674 = vld [vmem:[%s7 + $0x8] sm:$0xf]
    %v1675 = vld [vmem:[%s7 + $0xc] sm:$0xf]
    %v1676 = vld [vmem:[%s7 + $0x10] sm:$0xf]
    %v1677 = vld [vmem:[%s7 + $0x14] sm:$0xf]
    %v1678 = vld [vmem:[%s7 + $0x18] sm:$0xf]
    %v1679 = vld [vmem:[%s7 + $0x1c] sm:$0xf]
    %v1680 = vld [vmem:[%s7 + $0x20] sm:$0xf]
    %v1681 = vld [vmem:[%s7 + $0x24] sm:$0xf]
    %v1682 = vld [vmem:[%s7 + $0x28] sm:$0xf]
    %v1683 = vld [vmem:[%s7 + $0x2c] sm:$0xf]
    %v1684 = vld [vmem:[%s7 + $0x30] sm:$0xf]
    %v1685 = vld [vmem:[%s7 + $0x34] sm:$0xf]
    %v1686 = vld [vmem:[%s7 + $0x38] sm:$0xf]
    %v1687 = vld [vmem:[%s7 + $0x3c] sm:$0xf]
    %v1688 = vld [vmem:[%s7 + $0x40] sm:$0xf]
    %v1689 = vld [vmem:[%s7 + $0x44] sm:$0xf]
    %v1690 = vld [vmem:[%s7 + $0x48] sm:$0xf]
    %v1691 = vld [vmem:[%s7 + $0x4c] sm:$0xf]
    %v1692 = vld [vmem:[%s7 + $0x50] sm:$0xf]
    %v1693 = vld [vmem:[%s7 + $0x54] sm:$0xf]
    %v1694 = vld [vmem:[%s7 + $0x58] sm:$0xf]
    %v1695 = vld [vmem:[%s7 + $0x5c] sm:$0xf]
    %v1696 = vld [vmem:[%s7 + $0x60] sm:$0xf]
    %v1697 = vld [vmem:[%s7 + $0x64] sm:$0xf]
    %v1698 = vld [vmem:[%s7 + $0x68] sm:$0xf]
    %v1699 = vld [vmem:[%s7 + $0x6c] sm:$0xf]
    %v1700 = vld [vmem:[%s7 + $0x70] sm:$0xf]
    %v1701 = vld [vmem:[%s7 + $0x74] sm:$0xf]
    %v1702 = vld [vmem:[%s7 + $0x78] sm:$0xf]
    %v1703 = vld [vmem:[%s7 + $0x7c] sm:$0xf]
    %v1704 = vld [vmem:[%s7 + $0x80] sm:$0xf]
    %v1705 = vld [vmem:[%s7 + $0x84] sm:$0xf]
    %v1706 = vld [vmem:[%s7 + $0x88] sm:$0xf]
    %v1707 = vld [vmem:[%s7 + $0x8c] sm:$0xf]
    %v1708 = vld [vmem:[%s7 + $0x90] sm:$0xf]
    %v1709 = vld [vmem:[%s7 + $0x94] sm:$0xf]
    %v1710 = vld [vmem:[%s7 + $0x98] sm:$0xf]
    %v1711 = vld [vmem:[%s7 + $0x9c] sm:$0xf]
    %v1712 = vld [vmem:[%s7 + $0xa0] sm:$0xf]
    %v1713 = vld [vmem:[%s7 + $0xa4] sm:$0xf]
    %v1714 = vld [vmem:[%s7 + $0xa8] sm:$0xf]
    %v1715 = vld [vmem:[%s7 + $0xac] sm:$0xf]
    %v1716 = vld [vmem:[%s7 + $0xb0] sm:$0xf]
    %v1717 = vld [vmem:[%s7 + $0xb4] sm:$0xf]
    %v1718 = vld [vmem:[%s7 + $0xb8] sm:$0xf]
    %v1719 = vld [vmem:[%s7 + $0xbc] sm:$0xf]
    %v1768 = vunpack.c.l.b16 %v1672
    %v1769 = vunpack.c.l.b16 %v1673
    %v1770 = vunpack.c.l.b16 %v1674
    %v1771 = vunpack.c.l.b16 %v1675
    %v1772 = vunpack.c.l.b16 %v1676
    %v1773 = vunpack.c.l.b16 %v1677
    %v1774 = vunpack.c.l.b16 %v1678
    %v1775 = vunpack.c.l.b16 %v1679
    %v1776 = vunpack.c.l.b16 %v1680
    %v1777 = vunpack.c.l.b16 %v1681
    %v1778 = vunpack.c.l.b16 %v1682
    %v1779 = vunpack.c.l.b16 %v1683
    %v1780 = vunpack.c.l.b16 %v1684
    %v1781 = vunpack.c.l.b16 %v1685
    %v1782 = vunpack.c.l.b16 %v1686
    %v1783 = vunpack.c.l.b16 %v1687
    %v1784 = vunpack.c.l.b16 %v1688
    %v1785 = vunpack.c.l.b16 %v1689
    %v1786 = vunpack.c.l.b16 %v1690
    %v1787 = vunpack.c.l.b16 %v1691
    %v1788 = vunpack.c.l.b16 %v1692
    %v1789 = vunpack.c.l.b16 %v1693
    %v1790 = vunpack.c.l.b16 %v1694
    %v1791 = vunpack.c.l.b16 %v1695
    %v1792 = vunpack.c.l.b16 %v1696
    %v1793 = vunpack.c.l.b16 %v1697
    %v1794 = vunpack.c.l.b16 %v1698
    %v1795 = vunpack.c.l.b16 %v1699
    %v1796 = vunpack.c.l.b16 %v1700
    %v1797 = vunpack.c.l.b16 %v1701
    %v1798 = vunpack.c.l.b16 %v1702
    %v1799 = vunpack.c.l.b16 %v1703
    %v1800 = vunpack.c.l.b16 %v1704
    %v1801 = vunpack.c.l.b16 %v1705
    %v1802 = vunpack.c.l.b16 %v1706
    %v1803 = vunpack.c.l.b16 %v1707
    %v1804 = vunpack.c.l.b16 %v1708
    %v1805 = vunpack.c.l.b16 %v1709
    %v1806 = vunpack.c.l.b16 %v1710
    %v1807 = vunpack.c.l.b16 %v1711
    %v1808 = vunpack.c.l.b16 %v1712
    %v1809 = vunpack.c.l.b16 %v1713
    %v1810 = vunpack.c.l.b16 %v1714
    %v1811 = vunpack.c.l.b16 %v1715
    %v1812 = vunpack.c.l.b16 %v1716
    %v1813 = vunpack.c.l.b16 %v1717
    %v1814 = vunpack.c.l.b16 %v1718
    %v1815 = vunpack.c.l.b16 %v1719
    %v1816 = vpack.c.b16 %v1769, %v1768
    %v1817 = vpack.c.b16 %v1771, %v1770
    %v1818 = vpack.c.b16 %v1773, %v1772
    %v1819 = vpack.c.b16 %v1775, %v1774
    %v1820 = vpack.c.b16 %v1777, %v1776
    %v1821 = vpack.c.b16 %v1779, %v1778
    %v1822 = vpack.c.b16 %v1781, %v1780
    %v1823 = vpack.c.b16 %v1783, %v1782
    %v1824 = vpack.c.b16 %v1785, %v1784
    %v1825 = vpack.c.b16 %v1787, %v1786
    %v1826 = vpack.c.b16 %v1789, %v1788
    %v1827 = vpack.c.b16 %v1791, %v1790
    %v1828 = vpack.c.b16 %v1793, %v1792
    %v1829 = vpack.c.b16 %v1795, %v1794
    %v1830 = vpack.c.b16 %v1797, %v1796
    %v1831 = vpack.c.b16 %v1799, %v1798
    %v1832 = vpack.c.b16 %v1801, %v1800
    %v1833 = vpack.c.b16 %v1803, %v1802
    %v1834 = vpack.c.b16 %v1805, %v1804
    %v1835 = vpack.c.b16 %v1807, %v1806
    %v1836 = vpack.c.b16 %v1809, %v1808
    %v1837 = vpack.c.b16 %v1811, %v1810
    %v1838 = vpack.c.b16 %v1813, %v1812
    %v1839 = vpack.c.b16 %v1815, %v1814
    %1864 = vmatprep.subr.bf16.mxu0 0
    %1865 = vmatpush1.bf16.msra.mxu0 %v1823
    %1866 = vmatprep.subr.bf16.mxu0 0
    %1867 = vmatpush1.bf16.msra.mxu0 %v1822
    %1868 = vmatprep.subr.bf16.mxu0 0
    %1869 = vmatpush1.bf16.msra.mxu0 %v1821
    %1870 = vmatprep.subr.bf16.mxu0 0
    %1871 = vmatpush1.bf16.msra.mxu0 %v1820
    %1872 = vmatprep.subr.bf16.mxu0 0
    %1873 = vmatpush1.bf16.msra.mxu0 %v1819
    %1874 = vmatprep.subr.bf16.mxu0 0
    %1875 = vmatpush1.bf16.msra.mxu0 %v1818
    %1876 = vmatprep.subr.bf16.mxu0 0
    %1877 = vmatpush1.bf16.msra.mxu0 %v1817
    %1878 = vmatprep.subr.bf16.mxu0 0
    %1879 = vmatpush1.bf16.msra.mxu0 %v1816
    %1880 = vmatprep.subr.bf16.mxu0 0
    %1881 = vmatpush2.bf16.msra.mxu0 %v1831
    %1882 = vmatprep.subr.bf16.mxu0 0
    %1883 = vmatpush2.bf16.msra.mxu0 %v1830
    %1884 = vmatprep.subr.bf16.mxu0 0
    %1885 = vmatpush2.bf16.msra.mxu0 %v1829
    %1886 = vmatprep.subr.bf16.mxu0 0
    %1887 = vmatpush2.bf16.msra.mxu0 %v1828
    %1888 = vmatprep.subr.bf16.mxu0 0
    %1889 = vmatpush2.bf16.msra.mxu0 %v1827
    %1890 = vmatprep.subr.bf16.mxu0 0
    %1891 = vmatpush2.bf16.msra.mxu0 %v1826
    %1892 = vmatprep.subr.bf16.mxu0 0
    %1893 = vmatpush2.bf16.msra.mxu0 %v1825
    %1894 = vmatprep.subr.bf16.mxu0 0
    %1895 = vmatpush2.bf16.msra.mxu0 %v1824
    %1896 = vmatprep.mubr.bf16.mxu0 %v1667
    %1897 = vmatmul.mubr.bf16.gmra.mxu0 %v1666
    %v1898 = vpop.f32.mrf.mxu0
    %v1899 = vadd.f32 0.0, %v1898
    %v1900 = vpop.f32.mrf.mxu0
    %v1901 = vpop.f32.mrf.mxu0
    %v1902 = vadd.f32 0.0, %v1901
    %v1903 = vpop.f32.mrf.mxu0
    %1904 = vmatprep.mubr.bf16.mxu0 %v1670
    %1905 = vmatmul.mubr.bf16.gmra.mxu0 %v1669
    %v1906 = vpop.f32.mrf.mxu0
    %v1907 = vadd.f32 0.0, %v1906
    %v1908 = vpop.f32.mrf.mxu0
    %v1909 = vpop.f32.mrf.mxu0
    %v1910 = vadd.f32 0.0, %v1909
    %v1911 = vpop.f32.mrf.mxu0
    %1912 = vdwg.mxu0
    %1913 = vmatprep.subr.bf16.mxu0 0
    %1914 = vmatpush1.bf16.msra.mxu0 %v1839
    %1915 = vmatprep.subr.bf16.mxu0 0
    %1916 = vmatpush1.bf16.msra.mxu0 %v1838
    %1917 = vmatprep.subr.bf16.mxu0 0
    %1918 = vmatpush1.bf16.msra.mxu0 %v1837
    %1919 = vmatprep.subr.bf16.mxu0 0
    %1920 = vmatpush1.bf16.msra.mxu0 %v1836
    %1921 = vmatprep.subr.bf16.mxu0 0
    %1922 = vmatpush1.bf16.msra.mxu0 %v1835
    %1923 = vmatprep.subr.bf16.mxu0 0
    %1924 = vmatpush1.bf16.msra.mxu0 %v1834
    %1925 = vmatprep.subr.bf16.mxu0 0
    %1926 = vmatpush1.bf16.msra.mxu0 %v1833
    %1927 = vmatprep.subr.bf16.mxu0 0
    %1928 = vmatpush1.bf16.msra.mxu0 %v1832
    %1929 = vmatprep.subr.bf16.mxu0 0
    %1930 = vmatpush2.bf16.msra.mxu0 0
    %1931 = vmatprep.subr.bf16.mxu0 0
    %1932 = vmatpush2.bf16.msra.mxu0 0
    %1933 = vmatprep.subr.bf16.mxu0 0
    %1934 = vmatpush2.bf16.msra.mxu0 0
    %1935 = vmatprep.subr.bf16.mxu0 0
    %1936 = vmatpush2.bf16.msra.mxu0 0
    %1937 = vmatprep.subr.bf16.mxu0 0
    %1938 = vmatpush2.bf16.msra.mxu0 0
    %1939 = vmatprep.subr.bf16.mxu0 0
    %1940 = vmatpush2.bf16.msra.mxu0 0
    %1941 = vmatprep.subr.bf16.mxu0 0
    %1942 = vmatpush2.bf16.msra.mxu0 0
    %1943 = vmatprep.subr.bf16.mxu0 0
    %1944 = vmatpush2.bf16.msra.mxu0 0
    %1945 = vmatprep.mubr.bf16.mxu0 0
    %1946 = vmatmul.mubr.bf16.gmra.mxu0 %v1668
    %v1947 = vpop.f32.mrf.mxu0
    %v1948 = vadd.f32 %v1899, %v1947
    %v1949 = vpop.f32.mrf.mxu0
    %v1950 = vpop.f32.mrf.mxu0
    %v1951 = vadd.f32 %v1902, %v1950
    %v1952 = vpop.f32.mrf.mxu0
    %1953 = vmatprep.mubr.bf16.mxu0 0
    %1954 = vmatmul.mubr.bf16.gmra.mxu0 %v1671
    %v1955 = vpop.f32.mrf.mxu0
    %v1956 = vadd.f32 %v1907, %v1955
    %v1957 = vpop.f32.mrf.mxu0
    %v1958 = vpop.f32.mrf.mxu0
    %v1959 = vadd.f32 %v1910, %v1958
    %v1960 = vpop.f32.mrf.mxu0
    %1961 = vdwg.mxu0
    %v1962 = vadd.f32 %v1231, %v1948
    %v1963 = vadd.f32 %v1232, %v1951
    %v1964 = vadd.f32 %v1233, %v1956
    %v1965 = vadd.f32 %v1234, %v1959
    %v1966 = vlaneseq
    %v1967 = vshrl.u32 %v1966, 7
    %v1968 = vsub.s32 0, %v1967
    %v1969 = vrot.slane %v56, %v1968
    %v1970 = vadd.f32 %v1962, %v1969
    %v1971 = vadd.f32 %v1963, %v1969
    %v1972 = vadd.f32 %v1964, %v1969
    %v1973 = vadd.f32 %v1965, %v1969
    %v1974 = vpack.c.bf16 %v1971, %v1970
    %v1975 = vpack.c.bf16 %v1973, %v1972
    %v1976 = vld [vmem:[%s8] sm:$0xf]
    %v1977 = vld [vmem:[%s8 + $0x4] sm:$0xf]
    %v1978 = vld [vmem:[%s8 + $0x8] sm:$0xf]
    %v1979 = vld [vmem:[%s8 + $0xc] sm:$0xf]
    %v1980 = vld [vmem:[%s8 + $0x10] sm:$0xf]
    %v1981 = vld [vmem:[%s8 + $0x14] sm:$0xf]
    %v1982 = vld [vmem:[%s8 + $0x18] sm:$0xf]
    %v1983 = vld [vmem:[%s8 + $0x1c] sm:$0xf]
    %v1984 = vld [vmem:[%s8 + $0x20] sm:$0xf]
    %v1985 = vld [vmem:[%s8 + $0x24] sm:$0xf]
    %v1986 = vld [vmem:[%s8 + $0x28] sm:$0xf]
    %v1987 = vld [vmem:[%s8 + $0x2c] sm:$0xf]
    %v1988 = vlaneseq
    %v1989 = vshrl.u32 %v1988, 7
    %v1990 = vsub.s32 0, %v1989
    %v1991 = vrot.slane %v57, %v1990
    %v2004 = vunpack.c.l.b16 %v1976
    %v2005 = vunpack.c.l.b16 %v1977
    %v2006 = vunpack.c.l.b16 %v1978
    %v2007 = vunpack.c.l.b16 %v1979
    %v2008 = vunpack.c.l.b16 %v1980
    %v2009 = vunpack.c.l.b16 %v1981
    %v2010 = vunpack.c.l.b16 %v1982
    %v2011 = vunpack.c.l.b16 %v1983
    %v2012 = vunpack.c.l.b16 %v1984
    %v2013 = vunpack.c.l.b16 %v1985
    %v2014 = vunpack.c.l.b16 %v1986
    %v2015 = vunpack.c.l.b16 %v1987
    %v2016 = vpack.c.b16 %v2005, %v2004
    %v2017 = vpack.c.b16 %v2007, %v2006
    %v2018 = vpack.c.b16 %v2009, %v2008
    %v2019 = vpack.c.b16 %v2011, %v2010
    %v2020 = vpack.c.b16 %v2013, %v2012
    %v2021 = vpack.c.b16 %v2015, %v2014
    %v2029 = vsel %vm183, %v1974, 0
    %v2032 = vsel %vm183, %v1975, 0
    %2034 = vmatprep.subr.bf16.mxu0 0
    %2035 = vmatpush1.bf16.msra.mxu0 0
    %2036 = vmatprep.subr.bf16.mxu0 0
    %2037 = vmatpush1.bf16.msra.mxu0 0
    %2038 = vmatprep.subr.bf16.mxu0 0
    %2039 = vmatpush1.bf16.msra.mxu0 %v2021
    %2040 = vmatprep.subr.bf16.mxu0 0
    %2041 = vmatpush1.bf16.msra.mxu0 %v2020
    %2042 = vmatprep.subr.bf16.mxu0 0
    %2043 = vmatpush1.bf16.msra.mxu0 %v2019
    %2044 = vmatprep.subr.bf16.mxu0 0
    %2045 = vmatpush1.bf16.msra.mxu0 %v2018
    %2046 = vmatprep.subr.bf16.mxu0 0
    %2047 = vmatpush1.bf16.msra.mxu0 %v2017
    %2048 = vmatprep.subr.bf16.mxu0 0
    %2049 = vmatpush1.bf16.msra.mxu0 %v2016
    %2050 = vmatprep.subr.bf16.mxu0 0
    %2051 = vmatpush2.bf16.msra.mxu0 0
    %2052 = vmatprep.subr.bf16.mxu0 0
    %2053 = vmatpush2.bf16.msra.mxu0 0
    %2054 = vmatprep.subr.bf16.mxu0 0
    %2055 = vmatpush2.bf16.msra.mxu0 0
    %2056 = vmatprep.subr.bf16.mxu0 0
    %2057 = vmatpush2.bf16.msra.mxu0 0
    %2058 = vmatprep.subr.bf16.mxu0 0
    %2059 = vmatpush2.bf16.msra.mxu0 0
    %2060 = vmatprep.subr.bf16.mxu0 0
    %2061 = vmatpush2.bf16.msra.mxu0 0
    %2062 = vmatprep.subr.bf16.mxu0 0
    %2063 = vmatpush2.bf16.msra.mxu0 0
    %2064 = vmatprep.subr.bf16.mxu0 0
    %2065 = vmatpush2.bf16.msra.mxu0 0
    %2066 = vmatprep.mubr.bf16.mxu0 0
    %2067 = vmatmul.mubr.bf16.gmra.mxu0 %v2029
    %v2068 = vpop.f32.mrf.mxu0
    %v2069 = vadd.f32 %v1991, %v2068
    %v2070 = vpop.f32.mrf.mxu0
    %v2071 = vpop.f32.mrf.mxu0
    %v2072 = vadd.f32 %v1991, %v2071
    %v2073 = vpop.f32.mrf.mxu0
    %2074 = vmatprep.mubr.bf16.mxu0 0
    %2075 = vmatmul.mubr.bf16.gmra.mxu0 %v2032
    %v2076 = vpop.f32.mrf.mxu0
    %v2077 = vadd.f32 %v1991, %v2076
    %v2078 = vpop.f32.mrf.mxu0
    %v2079 = vpop.f32.mrf.mxu0
    %v2080 = vadd.f32 %v1991, %v2079
    %v2081 = vpop.f32.mrf.mxu0
    %2082 = vdwg.mxu0
    %v2083 = vmax.f32 %v2069, 0.0
    %v2084 = vmax.f32 %v2072, 0.0
    %v2085 = vmax.f32 %v2077, 0.0
    %v2086 = vmax.f32 %v2080, 0.0
    %v2087 = vlaneseq
    %v2088 = vshrl.u32 %v2087, 7
    %v2089 = vsub.s32 0, %v2088
    %v2090 = vrot.slane %v58, %v2089
    %v2091 = vmul.f32 %v2083, %v2090
    %v2092 = vmul.f32 %v2084, %v2090
    %v2093 = vmul.f32 %v2085, %v2090
    %v2094 = vmul.f32 %v2086, %v2090
    %v2095 = vsel %vm183, %v2091, 0.0
    %2096 = vadd.xlane.f32.xlu0 %v2095
    %v2097 = vpop.xlane.xlu0 %2096
    %v2098 = vsel %vm183, %v2092, 0.0
    %2099 = vadd.xlane.f32.xlu0 %v2098
    %v2100 = vpop.xlane.xlu0 %2099
    %v2101 = vsel %vm183, %v2093, 0.0
    %2102 = vadd.xlane.f32.xlu0 %v2101
    %v2103 = vpop.xlane.xlu0 %2102
    %v2104 = vsel %vm183, %v2094, 0.0
    %2105 = vadd.xlane.f32.xlu0 %v2104
    %v2106 = vpop.xlane.xlu0 %2105
    %v2107 = vlaneseq
    %v2108 = vshrl.u32 %v2107, 7
    %v2109 = vsub.s32 0, %v2108
    %v2110 = vrot.slane %v59, %v2109
    %v2111 = vadd.f32 %v2097, %v2110
    %v2112 = vadd.f32 %v2100, %v2110
    %v2113 = vadd.f32 %v2103, %v2110
    %v2114 = vadd.f32 %v2106, %v2110
    %v2115 = vld [vmem:[%s11] sm:$0x3]
    %v2116 = vld [vmem:[%s12] sm:$0xff]
    %v2117 = vld [vmem:[%s12 + $0x8] sm:$0xff]
    %v2118 = vld [vmem:[%s12 + $0x10] sm:$0xff]
    %v2119 = vld [vmem:[%s12 + $0x18] sm:$0xff]
    %v2120 = vld [vmem:[%s12 + $0x20] sm:$0xff]
    %v2121 = vld [vmem:[%s12 + $0x28] sm:$0xff]
    %v2122 = vld [vmem:[%s12 + $0x30] sm:$0xff]
    %v2123 = vld [vmem:[%s12 + $0x38] sm:$0xff]
    %v2124 = vld [vmem:[%s12 + $0x40] sm:$0xff]
    %v2125 = vld [vmem:[%s12 + $0x48] sm:$0xff]
    %v2126 = vld [vmem:[%s12 + $0x50] sm:$0xff]
    %v2127 = vld [vmem:[%s12 + $0x58] sm:$0xff]
    %2129 = vset.pattern.permute.xlu0 0
    %2130 = vperm.xlu0 %2129, %v2111
    %v2131 = vpop.permute.xlu0 %2130
    %2134 = vset.pattern.permute.xlu0 0
    %2135 = vperm.xlu0 %2134, %v2112
    %v2136 = vpop.permute.xlu0 %2135
    %2139 = vset.pattern.permute.xlu0 0
    %2140 = vperm.xlu0 %2139, %v2113
    %v2141 = vpop.permute.xlu0 %2140
    %2144 = vset.pattern.permute.xlu0 0
    %2145 = vperm.xlu0 %2144, %v2114
    %v2146 = vpop.permute.xlu0 %2145
    %v2148 = vmul.f32 %v2131, %v2116
    %v2149 = vmul.f32 %v2131, %v2117
    %v2150 = vmul.f32 %v2131, %v2118
    %v2151 = vmul.f32 %v2136, %v2119
    %v2152 = vmul.f32 %v2136, %v2120
    %v2153 = vmul.f32 %v2136, %v2121
    %v2154 = vmul.f32 %v2141, %v2122
    %v2155 = vmul.f32 %v2141, %v2123
    %v2156 = vmul.f32 %v2141, %v2124
    %v2157 = vmul.f32 %v2146, %v2125
    %v2158 = vmul.f32 %v2146, %v2126
    %v2159 = vmul.f32 %v2146, %v2127
    %v2161 = vsel %vm700, %v2115, 0
    %2163 = vmatprep.subr.mxu0 0.0
    %2164 = vmatpush1.msra.mxu0 0.0
    %2165 = vmatprep.subr.mxu0 0.0
    %2166 = vmatpush1.msra.mxu0 0.0
    %2167 = vmatprep.subr.mxu0 0.0
    %2168 = vmatpush1.msra.mxu0 0.0
    %2169 = vmatprep.subr.mxu0 0.0
    %2170 = vmatpush1.msra.mxu0 0.0
    %2171 = vmatprep.subr.mxu0 0.0
    %2172 = vmatpush1.msra.mxu0 0.0
    %2173 = vmatprep.subr.mxu0 0.0
    %2174 = vmatpush1.msra.mxu0 0.0
    %2175 = vmatprep.subr.mxu0 0.0
    %2176 = vmatpush1.msra.mxu0 0.0
    %2177 = vmatprep.subr.mxu0 0.0
    %2178 = vmatpush1.msra.mxu0 0.0
    %2179 = vmatprep.subr.mxu0 0.0
    %2180 = vmatpush1.msra.mxu0 0.0
    %2181 = vmatprep.subr.mxu0 0.0
    %2182 = vmatpush1.msra.mxu0 0.0
    %2183 = vmatprep.subr.mxu0 0.0
    %2184 = vmatpush1.msra.mxu0 0.0
    %2185 = vmatprep.subr.mxu0 0.0
    %2186 = vmatpush1.msra.mxu0 0.0
    %2187 = vmatprep.subr.mxu0 %v2158
    %2188 = vmatpush1.msra.mxu0 %v2157
    %2189 = vmatprep.subr.mxu0 %v2155
    %2190 = vmatpush1.msra.mxu0 %v2154
    %2191 = vmatprep.subr.mxu0 %v2152
    %2192 = vmatpush1.msra.mxu0 %v2151
    %2193 = vmatprep.subr.mxu0 %v2149
    %2194 = vmatpush1.msra.mxu0 %v2148
    %2195 = vmatprep.subr.mxu0 0.0
    %2196 = vmatpush2.msra.mxu0 0.0
    %2197 = vmatprep.subr.mxu0 0.0
    %2198 = vmatpush2.msra.mxu0 0.0
    %2199 = vmatprep.subr.mxu0 0.0
    %2200 = vmatpush2.msra.mxu0 0.0
    %2201 = vmatprep.subr.mxu0 0.0
    %2202 = vmatpush2.msra.mxu0 0.0
    %2203 = vmatprep.subr.mxu0 0.0
    %2204 = vmatpush2.msra.mxu0 0.0
    %2205 = vmatprep.subr.mxu0 0.0
    %2206 = vmatpush2.msra.mxu0 0.0
    %2207 = vmatprep.subr.mxu0 0.0
    %2208 = vmatpush2.msra.mxu0 0.0
    %2209 = vmatprep.subr.mxu0 0.0
    %2210 = vmatpush2.msra.mxu0 0.0
    %2211 = vmatprep.subr.mxu0 0.0
    %2212 = vmatpush2.msra.mxu0 0.0
    %2213 = vmatprep.subr.mxu0 0.0
    %2214 = vmatpush2.msra.mxu0 0.0
    %2215 = vmatprep.subr.mxu0 0.0
    %2216 = vmatpush2.msra.mxu0 0.0
    %2217 = vmatprep.subr.mxu0 0.0
    %2218 = vmatpush2.msra.mxu0 0.0
    %2219 = vmatprep.subr.mxu0 0.0
    %2220 = vmatpush2.msra.mxu0 0.0
    %2221 = vmatprep.subr.mxu0 0.0
    %2222 = vmatpush2.msra.mxu0 0.0
    %2223 = vmatprep.subr.mxu0 0.0
    %2224 = vmatpush2.msra.mxu0 0.0
    %2225 = vmatprep.subr.mxu0 0.0
    %2226 = vmatpush2.msra.mxu0 0.0
    %2227 = vmatprep.mubr.f32.mxu0 0.0
    %2228 = vmatmul.mubr.f32.gmra.mxu0 %v2161
    %v2229 = vpop.f32.mrf.mxu0
    %v2230 = vadd.f32 0.0, %v2229
    %v2231 = vpop.f32.mrf.mxu0
    %v2232 = vadd.f32 0.0, %v2231
    %2233 = vdwg.mxu0
    %2234 = vmatprep.subr.mxu0 0.0
    %2235 = vmatpush1.msra.mxu0 0.0
    %2236 = vmatprep.subr.mxu0 0.0
    %2237 = vmatpush1.msra.mxu0 0.0
    %2238 = vmatprep.subr.mxu0 0.0
    %2239 = vmatpush1.msra.mxu0 0.0
    %2240 = vmatprep.subr.mxu0 0.0
    %2241 = vmatpush1.msra.mxu0 0.0
    %2242 = vmatprep.subr.mxu0 0.0
    %2243 = vmatpush1.msra.mxu0 0.0
    %2244 = vmatprep.subr.mxu0 0.0
    %2245 = vmatpush1.msra.mxu0 0.0
    %2246 = vmatprep.subr.mxu0 0.0
    %2247 = vmatpush1.msra.mxu0 0.0
    %2248 = vmatprep.subr.mxu0 0.0
    %2249 = vmatpush1.msra.mxu0 0.0
    %2250 = vmatprep.subr.mxu0 0.0
    %2251 = vmatpush1.msra.mxu0 0.0
    %2252 = vmatprep.subr.mxu0 0.0
    %2253 = vmatpush1.msra.mxu0 0.0
    %2254 = vmatprep.subr.mxu0 0.0
    %2255 = vmatpush1.msra.mxu0 0.0
    %2256 = vmatprep.subr.mxu0 0.0
    %2257 = vmatpush1.msra.mxu0 0.0
    %2258 = vmatprep.subr.mxu0 0.0
    %2259 = vmatpush1.msra.mxu0 %v2159
    %2260 = vmatprep.subr.mxu0 0.0
    %2261 = vmatpush1.msra.mxu0 %v2156
    %2262 = vmatprep.subr.mxu0 0.0
    %2263 = vmatpush1.msra.mxu0 %v2153
    %2264 = vmatprep.subr.mxu0 0.0
    %2265 = vmatpush1.msra.mxu0 %v2150
    %2266 = vmatprep.subr.mxu0 0.0
    %2267 = vmatpush2.msra.mxu0 0.0
    %2268 = vmatprep.subr.mxu0 0.0
    %2269 = vmatpush2.msra.mxu0 0.0
    %2270 = vmatprep.subr.mxu0 0.0
    %2271 = vmatpush2.msra.mxu0 0.0
    %2272 = vmatprep.subr.mxu0 0.0
    %2273 = vmatpush2.msra.mxu0 0.0
    %2274 = vmatprep.subr.mxu0 0.0
    %2275 = vmatpush2.msra.mxu0 0.0
    %2276 = vmatprep.subr.mxu0 0.0
    %2277 = vmatpush2.msra.mxu0 0.0
    %2278 = vmatprep.subr.mxu0 0.0
    %2279 = vmatpush2.msra.mxu0 0.0
    %2280 = vmatprep.subr.mxu0 0.0
    %2281 = vmatpush2.msra.mxu0 0.0
    %2282 = vmatprep.subr.mxu0 0.0
    %2283 = vmatpush2.msra.mxu0 0.0
    %2284 = vmatprep.subr.mxu0 0.0
    %2285 = vmatpush2.msra.mxu0 0.0
    %2286 = vmatprep.subr.mxu0 0.0
    %2287 = vmatpush2.msra.mxu0 0.0
    %2288 = vmatprep.subr.mxu0 0.0
    %2289 = vmatpush2.msra.mxu0 0.0
    %2290 = vmatprep.subr.mxu0 0.0
    %2291 = vmatpush2.msra.mxu0 0.0
    %2292 = vmatprep.subr.mxu0 0.0
    %2293 = vmatpush2.msra.mxu0 0.0
    %2294 = vmatprep.subr.mxu0 0.0
    %2295 = vmatpush2.msra.mxu0 0.0
    %2296 = vmatprep.subr.mxu0 0.0
    %2297 = vmatpush2.msra.mxu0 0.0
    %2298 = vmatprep.mubr.f32.mxu0 0.0
    %2299 = vmatmul.mubr.f32.gmra.mxu0 %v2161
    %v2300 = vpop.f32.mrf.mxu0
    %v2301 = vadd.f32 0.0, %v2300
    %v2302 = vpop.f32.mrf.mxu0
    %2303 = vdwg.mxu0
    %v2306 = vcombine.low %v2230, %v2232
    %v2308 = vunpack.c.l.s4 1983009808
    %v2309 = vunpack.c.0.s8 %v2308
    %v2310 = vlaneseq
    %v2311 = vshrl.u32 %v2310, 7
    %v2312 = vsub.s32 %v2309, %v2311
    %v2313 = vrot.slane %v2306, %v2312
    %2315 = vst [vmem:[%s13] sm:$0xf] %v2313
    %vm2316 = vcmask 123904
    %2317 = vst.msk [vmem:[#allocation2] sm:$0x3] %vm2316, %v2301
    // Predicated region
    $region54: #{model_forward.1} parent=1 // pred_check
      _
    $region55: #{model_forward.1} parent=1 // pred_check_branch
      %2319 = sbr.rel (0) target = $region57
    $region56: #{model_forward.1} parent=1 // pred_region
      _
    $region57: #{model_forward.1} parent=1 // pred_fallthru
      _
    // Predicated region
    $region58: #{model_forward.1} parent=1 // pred_check
      _
    $region59: #{model_forward.1} parent=1 // pred_check_branch
      %2321 = sbr.rel (0) target = $region61
    $region60: #{model_forward.1} parent=1 // pred_region
      %s2323 = ssub.s32 32, 32
      %2324 = vsyncadd [#allocation3], %s2323
      %s2326 = sshll.u32 [#allocation2], 4
      %s2327 = int_to_ptr.vmem [resolvable:$true] %s2326
      %2329 = dma.vmem_to_hbm [thread:$0]  %s2327, 32, %s14, [#allocation3]
    $region61: #{model_forward.1} parent=1 // pred_fallthru
      _
    // Predicated region
    $region62: #{model_forward.1} parent=1 // pred_check
      _
    $region63: #{model_forward.1} parent=1 // pred_check_branch
      %2331 = sbr.rel (0) target = $region65
    $region64: #{model_forward.1} parent=1 // pred_region
      _
    $region65: #{model_forward.1} parent=1 // pred_fallthru
      _
    // Predicated region
    $region66: #{model_forward.1} parent=1 // pred_check
      _
    $region67: #{model_forward.1} parent=1 // pred_check_branch
      %2333 = sbr.rel (0) target = $region69
    $region68: #{model_forward.1} parent=1 // pred_region
      %2334 = dma.done [#allocation3], 32
    $region69: #{model_forward.1} parent=1 // pred_fallthru
      _
    %2335 = vsyncpa [#allocation3], 1

</llo_original>
